<compile_context>
chip_gen: v5e
topology: v5e:2x2
jax: 0.10.0
libtpu: 0.0.40
codegen_flags: <defaults>
</compile_context>

<pallas_src>
import jax
import jax.numpy as jnp
from jax.experimental import pallas as pl
from jax.experimental.pallas import tpu as pltpu


# ---------------------------------------------------------------------------
# Small helpers
# ---------------------------------------------------------------------------
def _round_up(x, m):
    return (x + m - 1) // m * m


def _pad2(a, rows, cols):
    return jnp.pad(a, ((0, rows - a.shape[0]), (0, cols - a.shape[1])))


def _choose_tile(M, max_tm=512):
    tm = max_tm if M >= max_tm else _round_up(M, 8)
    return tm, _round_up(M, tm)


# ---------------------------------------------------------------------------
# Pallas kernels
# ---------------------------------------------------------------------------
def _conv_pool_kernel(a_ref, w_ref, b_ref, o_ref):
    """Fused conv (as im2col matmul) + bias + relu + 2x2 maxpool.

    a_ref: (4, tm, Kpad) -- the four pool-window corners' im2col rows, stacked.
    pool(relu(conv)) == max over the four relu(matmul + bias) results
    (relu is monotone, so relu-then-max == max-then-relu).
    w_ref: (Kpad, 128), b_ref: (1, 128), o_ref: (tm, 128).
    """
    w = w_ref[...]
    b = b_ref[...]

    def corner(idx):
        y = jnp.dot(a_ref[idx], w, preferred_element_type=jnp.float32) + b
        return jnp.maximum(y, 0.0)

    o_ref[...] = jnp.maximum(
        jnp.maximum(corner(0), corner(1)),
        jnp.maximum(corner(2), corner(3)),
    ).astype(o_ref.dtype)


def _mlp_kernel(x_ref, w1_ref, b1_ref, w2_ref, b2_ref, w3_ref, b3_ref, o_ref):
    """Fused fc1+relu -> fc2+relu -> fc3; all weights resident in VMEM,
    intermediates never leave the kernel."""
    h = jnp.dot(x_ref[...], w1_ref[...], preferred_element_type=jnp.float32)
    h = jnp.maximum(h + b1_ref[...], 0.0)
    h = jnp.dot(h, w2_ref[...], preferred_element_type=jnp.float32)
    h = jnp.maximum(h + b2_ref[...], 0.0)
    y = jnp.dot(h, w3_ref[...], preferred_element_type=jnp.float32) + b3_ref[...]
    o_ref[...] = y.astype(o_ref.dtype)


# ---------------------------------------------------------------------------
# Wrappers
# ---------------------------------------------------------------------------
def conv_relu_pool(x_nhwc, wmat, bias, *, kh, kw, oc):
    """x: (B, H, W, C) NHWC; wmat: (Kpad, 128) pre-padded (kh,kw,C)-ordered;
    bias: (1, 128). Returns pool2x2(relu(conv_valid(x))) as (B, PH, PW, oc)."""
    B, H, W, C = x_nhwc.shape
    OH, OW = H - kh + 1, W - kw + 1
    PH, PW = OH // 2, OW // 2
    K = kh * kw * C
    Kpad, Npad = wmat.shape
    M = B * PH * PW
    tm, Mpad = _choose_tile(M)

    # im2col in (kh, kw, C) minor order (matches prepared weight layout).
    # NOTE: XLA glue on the host side; tiny at these shapes.
    patches = jnp.concatenate(
        [x_nhwc[:, i:i + OH, j:j + OW, :] for i in range(kh) for j in range(kw)],
        axis=-1)                                              # (B, OH, OW, K)

    # Stack the 4 pool-window corners into one lane-dense slab: (4, Mpad, Kpad).
    corners = jnp.stack(
        [patches[:, di::2, dj::2, :][:, :PH, :PW, :].reshape(M, K)
         for di in (0, 1) for dj in (0, 1)], axis=0)          # (4, M, K)
    corners = jnp.pad(corners, ((0, 0), (0, Mpad - M), (0, Kpad - K)))

    out = pl.pallas_call(
        _conv_pool_kernel,
        out_shape=jax.ShapeDtypeStruct((Mpad, Npad), jnp.float32),
        grid=(Mpad // tm,),
        in_specs=[
            pl.BlockSpec((4, tm, Kpad), lambda i: (0, i, 0)),
            pl.BlockSpec((Kpad, Npad), lambda i: (0, 0)),
            pl.BlockSpec((1, Npad), lambda i: (0, 0)),
        ],
        out_specs=pl.BlockSpec((tm, Npad), lambda i: (i, 0)),
        compiler_params=pltpu.CompilerParams(
            dimension_semantics=("parallel",)),
    )(corners, wmat, bias)

    return out[:M].reshape(B, PH, PW, Npad)[..., :oc]


def mlp_fused(x, w1, b1, w2, b2, w3, b3, *, out_dim):
    """x: (M, K_real). Weights/biases pre-padded to lane-dense shapes."""
    M = x.shape[0]
    K1, H1 = w1.shape
    H2 = w2.shape[1]
    N = w3.shape[1]
    tm, Mpad = _choose_tile(M)
    xp = _pad2(x, Mpad, K1)

    out = pl.pallas_call(
        _mlp_kernel,
        out_shape=jax.ShapeDtypeStruct((Mpad, N), jnp.float32),
        grid=(Mpad // tm,),
        in_specs=[
            pl.BlockSpec((tm, K1), lambda i: (i, 0)),
            pl.BlockSpec((K1, H1), lambda i: (0, 0)),
            pl.BlockSpec((1, H1), lambda i: (0, 0)),
            pl.BlockSpec((H1, H2), lambda i: (0, 0)),
            pl.BlockSpec((1, H2), lambda i: (0, 0)),
            pl.BlockSpec((H2, N), lambda i: (0, 0)),
            pl.BlockSpec((1, N), lambda i: (0, 0)),
        ],
        out_specs=pl.BlockSpec((tm, N), lambda i: (i, 0)),
        compiler_params=pltpu.CompilerParams(
            dimension_semantics=("parallel",)),
    )(xp, w1, b1, w2, b2, w3, b3)

    return out[:M, :out_dim]


# ---------------------------------------------------------------------------
# One-time parameter preparation (reshape / transpose / zero-pad to 128 lanes)
# ---------------------------------------------------------------------------
def prepare_params(params):
    def conv_prep(w, b):
        OC, C, KH, KW = w.shape
        K = KH * KW * C
        wm = w.transpose(2, 3, 1, 0).reshape(K, OC)       # (kh, kw, C) x OC
        wm = _pad2(wm, _round_up(K, 128), 128)
        bb = jnp.pad(b, (0, 128 - OC)).reshape(1, 128)
        return wm, bb

    c1w, c1b = conv_prep(params["conv1_w"], params["conv1_b"])
    c2w, c2b = conv_prep(params["conv2_w"], params["conv2_b"])

    # fc1 expects PyTorch's (C,H,W) flatten; our activations are NHWC, so
    # permute the fc1 weight columns to (H,W,C) order once.
    f1 = params["fc1_w"].reshape(120, 16, 5, 5).transpose(0, 2, 3, 1)
    f1 = f1.reshape(120, 400).T                           # (400, 120), HWC order
    f1 = _pad2(f1, 512, 128)
    f1b = jnp.pad(params["fc1_b"], (0, 128 - 120)).reshape(1, 128)
    f2 = _pad2(params["fc2_w"].T, 128, 128)
    f2b = jnp.pad(params["fc2_b"], (0, 128 - 84)).reshape(1, 128)
    f3 = _pad2(params["fc3_w"].T, 128, 128)
    f3b = jnp.pad(params["fc3_b"], (0, 128 - 10)).reshape(1, 128)

    return {"c1_w": c1w, "c1_b": c1b, "c2_w": c2w, "c2_b": c2b,
            "f1_w": f1, "f1_b": f1b, "f2_w": f2, "f2_b": f2b,
            "f3_w": f3, "f3_b": f3b}


# ---------------------------------------------------------------------------
# Net forward (matches the PyTorch module)
# ---------------------------------------------------------------------------
def net_forward(prep, x):
    x = x.transpose(0, 2, 3, 1)                                        # NCHW -> NHWC (once)
    x = conv_relu_pool(x, prep["c1_w"], prep["c1_b"], kh=5, kw=5, oc=6)   # (B,14,14,6)
    x = conv_relu_pool(x, prep["c2_w"], prep["c2_b"], kh=5, kw=5, oc=16)  # (B,5,5,16)
    x = x.reshape(x.shape[0], 5 * 5 * 16)                              # HWC flatten
    return mlp_fused(x, prep["f1_w"], prep["f1_b"], prep["f2_w"], prep["f2_b"],
                     prep["f3_w"], prep["f3_b"], out_dim=10)           # (B,10)


# ---------------------------------------------------------------------------
# Pure-JAX reference (for correctness check)
# ---------------------------------------------------------------------------
def _ref_forward(params, x):
    def conv(x, w, b):
        y = jax.lax.conv_general_dilated(
            x, w, window_strides=(1, 1), padding="VALID",
            dimension_numbers=("NCHW", "OIHW", "NCHW"))
        return jax.nn.relu(y + b[None, :, None, None])

    def pool(x):
        B, C, H, W = x.shape
        return x.reshape(B, C, H // 2, 2, W // 2, 2).max(axis=(3, 5))

    x = pool(conv(x, params["conv1_w"], params["conv1_b"]))
    x = pool(conv(x, params["conv2_w"], params["conv2_b"]))
    x = x.reshape(x.shape[0], -1)
    x = jax.nn.relu(x @ params["fc1_w"].T + params["fc1_b"])
    x = jax.nn.relu(x @ params["fc2_w"].T + params["fc2_b"])
    return x @ params["fc3_w"].T + params["fc3_b"]


# ---------------------------------------------------------------------------
# Deterministic parameter init (PyTorch default uniform(-1/sqrt(fan_in), ...))
# ---------------------------------------------------------------------------
def init_params(key):
    def uniform(k, shape, fan_in):
        bound = 1.0 / jnp.sqrt(jnp.float32(fan_in))
        return jax.random.uniform(k, shape, jnp.float32, -bound, bound)

    keys = jax.random.split(key, 10)
    return {
        "conv1_w": uniform(keys[0], (6, 3, 5, 5), 3 * 5 * 5),
        "conv1_b": uniform(keys[1], (6,), 3 * 5 * 5),
        "conv2_w": uniform(keys[2], (16, 6, 5, 5), 6 * 5 * 5),
        "conv2_b": uniform(keys[3], (16,), 6 * 5 * 5),
        "fc1_w": uniform(keys[4], (120, 400), 400),
        "fc1_b": uniform(keys[5], (120,), 400),
        "fc2_w": uniform(keys[6], (84, 120), 120),
        "fc2_b": uniform(keys[7], (84,), 120),
        "fc3_w": uniform(keys[8], (10, 84), 84),
        "fc3_b": uniform(keys[9], (10,), 84),
    }


if __name__ == "__main__":
    key = jax.random.PRNGKey(0)
    pkey, xkey = jax.random.split(key)
    params = init_params(pkey)
    prep = prepare_params(params)          # one-time weight reshape/pad (not per forward)
    # CIFAR-10 sized input (32x32 is required by the 16*5*5 flatten), small batch.
    x = jax.random.normal(xkey, (2, 3, 32, 32), jnp.float32)

    out = jax.jit(net_forward)(prep, x)
    out = jax.block_until_ready(out)

    ref = _ref_forward(params, x)
    assert out.shape == (2, 10)
    assert jnp.allclose(out, ref, atol=1e-3, rtol=1e-3), float(
        jnp.max(jnp.abs(out - ref)))

    print("KERNEL_OK")
</pallas_src>

<mosaic_0001>
module attributes {stable_mosaic.version = 11 : i64} {
  func.func @_conv_pool_kernel(%arg0: i32, %arg1: memref<4x392x128xf32, #tpu.memory_space<vmem>>, %arg2: memref<128x128xf32, #tpu.memory_space<vmem>>, %arg3: memref<1x128xf32, #tpu.memory_space<vmem>>, %arg4: memref<392x128xf32, #tpu.memory_space<vmem>>) attributes {dimension_semantics = [#tpu.dimension_semantics<parallel>], iteration_bounds = array<i64: 1>, scalar_prefetch = 0 : i64, scratch_operands = 0 : i64, tpu.core_type = #tpu.core_type<tc>, window_params = [{transform_indices = @transform_0, window_bounds = array<i64: 4, 392, 128>}, {pipeline_mode = #tpu.pipeline_mode<synchronous>, transform_indices = @transform_1, window_bounds = array<i64: 128, 128>}, {pipeline_mode = #tpu.pipeline_mode<synchronous>, transform_indices = @transform_2, window_bounds = array<i64: 1, 128>}, {transform_indices = @transform_3, window_bounds = array<i64: 392, 128>}]} {
    %c0 = arith.constant 0 : index
    %c0_0 = arith.constant 0 : index
    %0 = vector.load %arg2[%c0, %c0_0] : memref<128x128xf32, #tpu.memory_space<vmem>>, vector<128x128xf32>
    %c0_1 = arith.constant 0 : index
    %c0_2 = arith.constant 0 : index
    %1 = vector.load %arg3[%c0_1, %c0_2] : memref<1x128xf32, #tpu.memory_space<vmem>>, vector<1x128xf32>
    %c0_3 = arith.constant 0 : index
    %c0_4 = arith.constant 0 : index
    %c0_5 = arith.constant 0 : index
    %2 = vector.load %arg1[%c0_3, %c0_4, %c0_5] : memref<4x392x128xf32, #tpu.memory_space<vmem>>, vector<1x392x128xf32>
    %3 = vector.shape_cast %2 : vector<1x392x128xf32> to vector<392x128xf32>
    %cst = arith.constant dense<0.000000e+00> : vector<392x128xf32>
    %4 = tpu.matmul %3, %0, %cst {dimension_numbers = #tpu.dot_dimension_numbers<[1], [0], [0], [1], [0, 0, 1, 1], [], []>} : vector<392x128xf32>, vector<128x128xf32>, vector<392x128xf32> -> vector<392x128xf32>
    %5 = vector.broadcast %1 : vector<1x128xf32> to vector<392x128xf32>
    %6 = arith.addf %4, %5 : vector<392x128xf32>
    %cst_6 = arith.constant 0.000000e+00 : f32
    %7 = vector.broadcast %cst_6 : f32 to vector<392x128xf32>
    %8 = arith.maximumf %6, %7 : vector<392x128xf32>
    %c1 = arith.constant 1 : index
    %c0_7 = arith.constant 0 : index
    %c0_8 = arith.constant 0 : index
    %9 = vector.load %arg1[%c1, %c0_7, %c0_8] : memref<4x392x128xf32, #tpu.memory_space<vmem>>, vector<1x392x128xf32>
    %10 = vector.shape_cast %9 : vector<1x392x128xf32> to vector<392x128xf32>
    %cst_9 = arith.constant dense<0.000000e+00> : vector<392x128xf32>
    %11 = tpu.matmul %10, %0, %cst_9 {dimension_numbers = #tpu.dot_dimension_numbers<[1], [0], [0], [1], [0, 0, 1, 1], [], []>} : vector<392x128xf32>, vector<128x128xf32>, vector<392x128xf32> -> vector<392x128xf32>
    %12 = vector.broadcast %1 : vector<1x128xf32> to vector<392x128xf32>
    %13 = arith.addf %11, %12 : vector<392x128xf32>
    %cst_10 = arith.constant 0.000000e+00 : f32
    %14 = vector.broadcast %cst_10 : f32 to vector<392x128xf32>
    %15 = arith.maximumf %13, %14 : vector<392x128xf32>
    %16 = arith.maximumf %8, %15 : vector<392x128xf32>
    %c2 = arith.constant 2 : index
    %c0_11 = arith.constant 0 : index
    %c0_12 = arith.constant 0 : index
    %17 = vector.load %arg1[%c2, %c0_11, %c0_12] : memref<4x392x128xf32, #tpu.memory_space<vmem>>, vector<1x392x128xf32>
    %18 = vector.shape_cast %17 : vector<1x392x128xf32> to vector<392x128xf32>
    %cst_13 = arith.constant dense<0.000000e+00> : vector<392x128xf32>
    %19 = tpu.matmul %18, %0, %cst_13 {dimension_numbers = #tpu.dot_dimension_numbers<[1], [0], [0], [1], [0, 0, 1, 1], [], []>} : vector<392x128xf32>, vector<128x128xf32>, vector<392x128xf32> -> vector<392x128xf32>
    %20 = vector.broadcast %1 : vector<1x128xf32> to vector<392x128xf32>
    %21 = arith.addf %19, %20 : vector<392x128xf32>
    %cst_14 = arith.constant 0.000000e+00 : f32
    %22 = vector.broadcast %cst_14 : f32 to vector<392x128xf32>
    %23 = arith.maximumf %21, %22 : vector<392x128xf32>
    %c3 = arith.constant 3 : index
    %c0_15 = arith.constant 0 : index
    %c0_16 = arith.constant 0 : index
    %24 = vector.load %arg1[%c3, %c0_15, %c0_16] : memref<4x392x128xf32, #tpu.memory_space<vmem>>, vector<1x392x128xf32>
    %25 = vector.shape_cast %24 : vector<1x392x128xf32> to vector<392x128xf32>
    %cst_17 = arith.constant dense<0.000000e+00> : vector<392x128xf32>
    %26 = tpu.matmul %25, %0, %cst_17 {dimension_numbers = #tpu.dot_dimension_numbers<[1], [0], [0], [1], [0, 0, 1, 1], [], []>} : vector<392x128xf32>, vector<128x128xf32>, vector<392x128xf32> -> vector<392x128xf32>
    %27 = vector.broadcast %1 : vector<1x128xf32> to vector<392x128xf32>
    %28 = arith.addf %26, %27 : vector<392x128xf32>
    %cst_18 = arith.constant 0.000000e+00 : f32
    %29 = vector.broadcast %cst_18 : f32 to vector<392x128xf32>
    %30 = arith.maximumf %28, %29 : vector<392x128xf32>
    %31 = arith.maximumf %23, %30 : vector<392x128xf32>
    %32 = arith.maximumf %16, %31 : vector<392x128xf32>
    %c0_19 = arith.constant 0 : index
    %c0_20 = arith.constant 0 : index
    %33 = vector.load %arg4[%c0_19, %c0_20] : memref<392x128xf32, #tpu.memory_space<vmem>>, vector<392x128xf32>
    tpu.vector_store %arg4[%c0_19, %c0_20], %32 {strides = array<i32>} : memref<392x128xf32, #tpu.memory_space<vmem>>, vector<392x128xf32>,
    return
  }
  func.func @transform_0(%arg0: i32) -> (i32, i32, i32) {
    %c0_i32 = arith.constant 0 : i32
    %c0_i32_0 = arith.constant 0 : i32
    %c0_i32_1 = arith.constant 0 : i32
    return %c0_i32, %arg0, %c0_i32_0 : i32, i32, i32
  }
  func.func @transform_1(%arg0: i32) -> (i32, i32) {
    %c0_i32 = arith.constant 0 : i32
    %c0_i32_0 = arith.constant 0 : i32
    %c0_i32_1 = arith.constant 0 : i32
    return %c0_i32, %c0_i32_0 : i32, i32
  }
  func.func @transform_2(%arg0: i32) -> (i32, i32) {
    %c0_i32 = arith.constant 0 : i32
    %c0_i32_0 = arith.constant 0 : i32
    %c0_i32_1 = arith.constant 0 : i32
    return %c0_i32, %c0_i32_0 : i32, i32
  }
  func.func @transform_3(%arg0: i32) -> (i32, i32) {
    %c0_i32 = arith.constant 0 : i32
    %c0_i32_0 = arith.constant 0 : i32
    return %arg0, %c0_i32 : i32, i32
  }
}

module attributes {stable_mosaic.version = 11 : i64} {
  func.func @_conv_pool_kernel(%arg0: i32, %arg1: memref<4x56x256xf32, #tpu.memory_space<vmem>>, %arg2: memref<256x128xf32, #tpu.memory_space<vmem>>, %arg3: memref<1x128xf32, #tpu.memory_space<vmem>>, %arg4: memref<56x128xf32, #tpu.memory_space<vmem>>) attributes {dimension_semantics = [#tpu.dimension_semantics<parallel>], iteration_bounds = array<i64: 1>, scalar_prefetch = 0 : i64, scratch_operands = 0 : i64, tpu.core_type = #tpu.core_type<tc>, window_params = [{transform_indices = @transform_0, window_bounds = array<i64: 4, 56, 256>}, {pipeline_mode = #tpu.pipeline_mode<synchronous>, transform_indices = @transform_1, window_bounds = array<i64: 256, 128>}, {pipeline_mode = #tpu.pipeline_mode<synchronous>, transform_indices = @transform_2, window_bounds = array<i64: 1, 128>}, {transform_indices = @transform_3, window_bounds = array<i64: 56, 128>}]} {
    %c0 = arith.constant 0 : index
    %c0_0 = arith.constant 0 : index
    %0 = vector.load %arg2[%c0, %c0_0] : memref<256x128xf32, #tpu.memory_space<vmem>>, vector<256x128xf32>
    %c0_1 = arith.constant 0 : index
    %c0_2 = arith.constant 0 : index
    %1 = vector.load %arg3[%c0_1, %c0_2] : memref<1x128xf32, #tpu.memory_space<vmem>>, vector<1x128xf32>
    %c0_3 = arith.constant 0 : index
    %c0_4 = arith.constant 0 : index
    %c0_5 = arith.constant 0 : index
    %2 = vector.load %arg1[%c0_3, %c0_4, %c0_5] : memref<4x56x256xf32, #tpu.memory_space<vmem>>, vector<1x56x256xf32>
    %3 = vector.shape_cast %2 : vector<1x56x256xf32> to vector<56x256xf32>
    %cst = arith.constant dense<0.000000e+00> : vector<56x128xf32>
    %4 = tpu.matmul %3, %0, %cst {dimension_numbers = #tpu.dot_dimension_numbers<[1], [0], [0], [1], [0, 0, 1, 1], [], []>} : vector<56x256xf32>, vector<256x128xf32>, vector<56x128xf32> -> vector<56x128xf32>
    %5 = vector.broadcast %1 : vector<1x128xf32> to vector<56x128xf32>
    %6 = arith.addf %4, %5 : vector<56x128xf32>
    %cst_6 = arith.constant 0.000000e+00 : f32
    %7 = vector.broadcast %cst_6 : f32 to vector<56x128xf32>
    %8 = arith.maximumf %6, %7 : vector<56x128xf32>
    %c1 = arith.constant 1 : index
    %c0_7 = arith.constant 0 : index
    %c0_8 = arith.constant 0 : index
    %9 = vector.load %arg1[%c1, %c0_7, %c0_8] : memref<4x56x256xf32, #tpu.memory_space<vmem>>, vector<1x56x256xf32>
    %10 = vector.shape_cast %9 : vector<1x56x256xf32> to vector<56x256xf32>
    %cst_9 = arith.constant dense<0.000000e+00> : vector<56x128xf32>
    %11 = tpu.matmul %10, %0, %cst_9 {dimension_numbers = #tpu.dot_dimension_numbers<[1], [0], [0], [1], [0, 0, 1, 1], [], []>} : vector<56x256xf32>, vector<256x128xf32>, vector<56x128xf32> -> vector<56x128xf32>
    %12 = vector.broadcast %1 : vector<1x128xf32> to vector<56x128xf32>
    %13 = arith.addf %11, %12 : vector<56x128xf32>
    %cst_10 = arith.constant 0.000000e+00 : f32
    %14 = vector.broadcast %cst_10 : f32 to vector<56x128xf32>
    %15 = arith.maximumf %13, %14 : vector<56x128xf32>
    %16 = arith.maximumf %8, %15 : vector<56x128xf32>
    %c2 = arith.constant 2 : index
    %c0_11 = arith.constant 0 : index
    %c0_12 = arith.constant 0 : index
    %17 = vector.load %arg1[%c2, %c0_11, %c0_12] : memref<4x56x256xf32, #tpu.memory_space<vmem>>, vector<1x56x256xf32>
    %18 = vector.shape_cast %17 : vector<1x56x256xf32> to vector<56x256xf32>
    %cst_13 = arith.constant dense<0.000000e+00> : vector<56x128xf32>
    %19 = tpu.matmul %18, %0, %cst_13 {dimension_numbers = #tpu.dot_dimension_numbers<[1], [0], [0], [1], [0, 0, 1, 1], [], []>} : vector<56x256xf32>, vector<256x128xf32>, vector<56x128xf32> -> vector<56x128xf32>
    %20 = vector.broadcast %1 : vector<1x128xf32> to vector<56x128xf32>
    %21 = arith.addf %19, %20 : vector<56x128xf32>
    %cst_14 = arith.constant 0.000000e+00 : f32
    %22 = vector.broadcast %cst_14 : f32 to vector<56x128xf32>
    %23 = arith.maximumf %21, %22 : vector<56x128xf32>
    %c3 = arith.constant 3 : index
    %c0_15 = arith.constant 0 : index
    %c0_16 = arith.constant 0 : index
    %24 = vector.load %arg1[%c3, %c0_15, %c0_16] : memref<4x56x256xf32, #tpu.memory_space<vmem>>, vector<1x56x256xf32>
    %25 = vector.shape_cast %24 : vector<1x56x256xf32> to vector<56x256xf32>
    %cst_17 = arith.constant dense<0.000000e+00> : vector<56x128xf32>
    %26 = tpu.matmul %25, %0, %cst_17 {dimension_numbers = #tpu.dot_dimension_numbers<[1], [0], [0], [1], [0, 0, 1, 1], [], []>} : vector<56x256xf32>, vector<256x128xf32>, vector<56x128xf32> -> vector<56x128xf32>
    %27 = vector.broadcast %1 : vector<1x128xf32> to vector<56x128xf32>
    %28 = arith.addf %26, %27 : vector<56x128xf32>
    %cst_18 = arith.constant 0.000000e+00 : f32
    %29 = vector.broadcast %cst_18 : f32 to vector<56x128xf32>
    %30 = arith.maximumf %28, %29 : vector<56x128xf32>
    %31 = arith.maximumf %23, %30 : vector<56x128xf32>
    %32 = arith.maximumf %16, %31 : vector<56x128xf32>
    %c0_19 = arith.constant 0 : index
    %c0_20 = arith.constant 0 : index
    %33 = vector.load %arg4[%c0_19, %c0_20] : memref<56x128xf32, #tpu.memory_space<vmem>>, vector<56x128xf32>
    tpu.vector_store %arg4[%c0_19, %c0_20], %32 {strides = array<i32>} : memref<56x128xf32, #tpu.memory_space<vmem>>, vector<56x128xf32>,
    return
  }
  func.func @transform_0(%arg0: i32) -> (i32, i32, i32) {
    %c0_i32 = arith.constant 0 : i32
    %c0_i32_0 = arith.constant 0 : i32
    %c0_i32_1 = arith.constant 0 : i32
    return %c0_i32, %arg0, %c0_i32_0 : i32, i32, i32
  }
  func.func @transform_1(%arg0: i32) -> (i32, i32) {
    %c0_i32 = arith.constant 0 : i32
    %c0_i32_0 = arith.constant 0 : i32
    %c0_i32_1 = arith.constant 0 : i32
    return %c0_i32, %c0_i32_0 : i32, i32
  }
  func.func @transform_2(%arg0: i32) -> (i32, i32) {
    %c0_i32 = arith.constant 0 : i32
    %c0_i32_0 = arith.constant 0 : i32
    %c0_i32_1 = arith.constant 0 : i32
    return %c0_i32, %c0_i32_0 : i32, i32
  }
  func.func @transform_3(%arg0: i32) -> (i32, i32) {
    %c0_i32 = arith.constant 0 : i32
    %c0_i32_0 = arith.constant 0 : i32
    return %arg0, %c0_i32 : i32, i32
  }
}

module attributes {stable_mosaic.version = 11 : i64} {
  func.func @_mlp_kernel(%arg0: i32, %arg1: memref<8x512xf32, #tpu.memory_space<vmem>>, %arg2: memref<512x128xf32, #tpu.memory_space<vmem>>, %arg3: memref<1x128xf32, #tpu.memory_space<vmem>>, %arg4: memref<128x128xf32, #tpu.memory_space<vmem>>, %arg5: memref<1x128xf32, #tpu.memory_space<vmem>>, %arg6: memref<128x128xf32, #tpu.memory_space<vmem>>, %arg7: memref<1x128xf32, #tpu.memory_space<vmem>>, %arg8: memref<8x128xf32, #tpu.memory_space<vmem>>) attributes {dimension_semantics = [#tpu.dimension_semantics<parallel>], iteration_bounds = array<i64: 1>, scalar_prefetch = 0 : i64, scratch_operands = 0 : i64, tpu.core_type = #tpu.core_type<tc>, window_params = [{transform_indices = @transform_0, window_bounds = array<i64: 8, 512>}, {pipeline_mode = #tpu.pipeline_mode<synchronous>, transform_indices = @transform_1, window_bounds = array<i64: 512, 128>}, {pipeline_mode = #tpu.pipeline_mode<synchronous>, transform_indices = @transform_2, window_bounds = array<i64: 1, 128>}, {pipeline_mode = #tpu.pipeline_mode<synchronous>, transform_indices = @transform_3, window_bounds = array<i64: 128, 128>}, {pipeline_mode = #tpu.pipeline_mode<synchronous>, transform_indices = @transform_4, window_bounds = array<i64: 1, 128>}, {pipeline_mode = #tpu.pipeline_mode<synchronous>, transform_indices = @transform_5, window_bounds = array<i64: 128, 128>}, {pipeline_mode = #tpu.pipeline_mode<synchronous>, transform_indices = @transform_6, window_bounds = array<i64: 1, 128>}, {transform_indices = @transform_7, window_bounds = array<i64: 8, 128>}]} {
    %c0 = arith.constant 0 : index
    %c0_0 = arith.constant 0 : index
    %0 = vector.load %arg1[%c0, %c0_0] : memref<8x512xf32, #tpu.memory_space<vmem>>, vector<8x512xf32>
    %c0_1 = arith.constant 0 : index
    %c0_2 = arith.constant 0 : index
    %1 = vector.load %arg2[%c0_1, %c0_2] : memref<512x128xf32, #tpu.memory_space<vmem>>, vector<512x128xf32>
    %cst = arith.constant dense<0.000000e+00> : vector<8x128xf32>
    %2 = tpu.matmul %0, %1, %cst {dimension_numbers = #tpu.dot_dimension_numbers<[1], [0], [0], [1], [0, 0, 1, 1], [], []>} : vector<8x512xf32>, vector<512x128xf32>, vector<8x128xf32> -> vector<8x128xf32>
    %c0_3 = arith.constant 0 : index
    %c0_4 = arith.constant 0 : index
    %3 = vector.load %arg3[%c0_3, %c0_4] : memref<1x128xf32, #tpu.memory_space<vmem>>, vector<1x128xf32>
    %4 = vector.broadcast %3 : vector<1x128xf32> to vector<8x128xf32>
    %5 = arith.addf %2, %4 : vector<8x128xf32>
    %cst_5 = arith.constant 0.000000e+00 : f32
    %6 = vector.broadcast %cst_5 : f32 to vector<8x128xf32>
    %7 = arith.maximumf %5, %6 : vector<8x128xf32>
    %c0_6 = arith.constant 0 : index
    %c0_7 = arith.constant 0 : index
    %8 = vector.load %arg4[%c0_6, %c0_7] : memref<128x128xf32, #tpu.memory_space<vmem>>, vector<128x128xf32>
    %cst_8 = arith.constant dense<0.000000e+00> : vector<8x128xf32>
    %9 = tpu.matmul %7, %8, %cst_8 {dimension_numbers = #tpu.dot_dimension_numbers<[1], [0], [0], [1], [0, 0, 1, 1], [], []>} : vector<8x128xf32>, vector<128x128xf32>, vector<8x128xf32> -> vector<8x128xf32>
    %c0_9 = arith.constant 0 : index
    %c0_10 = arith.constant 0 : index
    %10 = vector.load %arg5[%c0_9, %c0_10] : memref<1x128xf32, #tpu.memory_space<vmem>>, vector<1x128xf32>
    %11 = vector.broadcast %10 : vector<1x128xf32> to vector<8x128xf32>
    %12 = arith.addf %9, %11 : vector<8x128xf32>
    %cst_11 = arith.constant 0.000000e+00 : f32
    %13 = vector.broadcast %cst_11 : f32 to vector<8x128xf32>
    %14 = arith.maximumf %12, %13 : vector<8x128xf32>
    %c0_12 = arith.constant 0 : index
    %c0_13 = arith.constant 0 : index
    %15 = vector.load %arg6[%c0_12, %c0_13] : memref<128x128xf32, #tpu.memory_space<vmem>>, vector<128x128xf32>
    %cst_14 = arith.constant dense<0.000000e+00> : vector<8x128xf32>
    %16 = tpu.matmul %14, %15, %cst_14 {dimension_numbers = #tpu.dot_dimension_numbers<[1], [0], [0], [1], [0, 0, 1, 1], [], []>} : vector<8x128xf32>, vector<128x128xf32>, vector<8x128xf32> -> vector<8x128xf32>
    %c0_15 = arith.constant 0 : index
    %c0_16 = arith.constant 0 : index
    %17 = vector.load %arg7[%c0_15, %c0_16] : memref<1x128xf32, #tpu.memory_space<vmem>>, vector<1x128xf32>
    %18 = vector.broadcast %17 : vector<1x128xf32> to vector<8x128xf32>
    %19 = arith.addf %16, %18 : vector<8x128xf32>
    %c0_17 = arith.constant 0 : index
    %c0_18 = arith.constant 0 : index
    %20 = vector.load %arg8[%c0_17, %c0_18] : memref<8x128xf32, #tpu.memory_space<vmem>>, vector<8x128xf32>
    tpu.vector_store %arg8[%c0_17, %c0_18], %19 {strides = array<i32>} : memref<8x128xf32, #tpu.memory_space<vmem>>, vector<8x128xf32>,
    return
  }
  func.func @transform_0(%arg0: i32) -> (i32, i32) {
    %c0_i32 = arith.constant 0 : i32
    %c0_i32_0 = arith.constant 0 : i32
    return %arg0, %c0_i32 : i32, i32
  }
  func.func @transform_1(%arg0: i32) -> (i32, i32) {
    %c0_i32 = arith.constant 0 : i32
    %c0_i32_0 = arith.constant 0 : i32
    %c0_i32_1 = arith.constant 0 : i32
    return %c0_i32, %c0_i32_0 : i32, i32
  }
  func.func @transform_2(%arg0: i32) -> (i32, i32) {
    %c0_i32 = arith.constant 0 : i32
    %c0_i32_0 = arith.constant 0 : i32
    %c0_i32_1 = arith.constant 0 : i32
    return %c0_i32, %c0_i32_0 : i32, i32
  }
  func.func @transform_3(%arg0: i32) -> (i32, i32) {
    %c0_i32 = arith.constant 0 : i32
    %c0_i32_0 = arith.constant 0 : i32
    %c0_i32_1 = arith.constant 0 : i32
    return %c0_i32, %c0_i32_0 : i32, i32
  }
  func.func @transform_4(%arg0: i32) -> (i32, i32) {
    %c0_i32 = arith.constant 0 : i32
    %c0_i32_0 = arith.constant 0 : i32
    %c0_i32_1 = arith.constant 0 : i32
    return %c0_i32, %c0_i32_0 : i32, i32
  }
  func.func @transform_5(%arg0: i32) -> (i32, i32) {
    %c0_i32 = arith.constant 0 : i32
    %c0_i32_0 = arith.constant 0 : i32
    %c0_i32_1 = arith.constant 0 : i32
    return %c0_i32, %c0_i32_0 : i32, i32
  }
  func.func @transform_6(%arg0: i32) -> (i32, i32) {
    %c0_i32 = arith.constant 0 : i32
    %c0_i32_0 = arith.constant 0 : i32
    %c0_i32_1 = arith.constant 0 : i32
    return %c0_i32, %c0_i32_0 : i32, i32
  }
  func.func @transform_7(%arg0: i32) -> (i32, i32) {
    %c0_i32 = arith.constant 0 : i32
    %c0_i32_0 = arith.constant 0 : i32
    return %arg0, %c0_i32 : i32, i32
  }
}

</mosaic_0001>

<llo_original>
// kernel: net_forward.3
$region0: #{net_forward.3}
  #allocation0 [shape = 'u32[]', space=smem, size = 0x4, offset = 0x4, fixed_abs, tag = 'smem constant byte address 0x4 - core index']
  #allocation1 [shape = 'u32[72,128]{1,0:T(1,128)}', space=vmem, size = 0x9000, scoped, tag = 'internal scratch']
  %s0 = inlined_call_operand.vmem [shape: f32[4,392,128], index: 0, kind: input, shape index: {}]
  %s1 = inlined_call_operand.vmem [shape: f32[128,128], index: 1, kind: input, shape index: {}]
  %s2 = inlined_call_operand.vmem [shape: f32[1,128], index: 2, kind: input, shape index: {}]
  %s3 = inlined_call_operand.vmem [shape: f32[392,128], index: 3, kind: output, shape index: {}]
  %s4 = sld [smem:[#allocation0]]
  $region22: #{net_forward.3} parent=0
    _
  %s6 = ssub.s32 1, %s4
  %s7 = scalar_select 0, %s6, %s4
  // Predicated region
  $region2: #{net_forward.3} parent=0 // pred_check
    _
  $region3: #{net_forward.3} parent=0 // pred_check_branch
    %9 = sbr.rel (0) target = $region5
  $region4: #{net_forward.3} parent=0 // pred_region
    _
  $region5: #{net_forward.3} parent=0 // pred_fallthru
    _
  // Predicated region
  $region6: #{net_forward.3} parent=0 // pred_check
    _
  $region7: #{net_forward.3} parent=0 // pred_check_branch
    %11 = sbr.rel (0) target = $region9
  $region8: #{net_forward.3} parent=0 // pred_region
    _
  $region9: #{net_forward.3} parent=0 // pred_fallthru
    _
  // Predicated region
  $region10: #{net_forward.3} parent=0 // pred_check
    _
  $region11: #{net_forward.3} parent=0 // pred_check_branch
    %13 = sbr.rel (0) target = $region13
  $region12: #{net_forward.3} parent=0 // pred_region
    _
  $region13: #{net_forward.3} parent=0 // pred_fallthru
    _
  %v14 = vld [vmem:[%s1] sm:$0xff]
  %v15 = vld [vmem:[%s1 + $0x8] sm:$0xff]
  %v16 = vld [vmem:[%s1 + $0x10] sm:$0xff]
  %v17 = vld [vmem:[%s1 + $0x18] sm:$0xff]
  %v18 = vld [vmem:[%s1 + $0x20] sm:$0xff]
  %v19 = vld [vmem:[%s1 + $0x28] sm:$0xff]
  %v20 = vld [vmem:[%s1 + $0x30] sm:$0xff]
  %v21 = vld [vmem:[%s1 + $0x38] sm:$0xff]
  %v22 = vld [vmem:[%s1 + $0x40] sm:$0xff]
  %v23 = vld [vmem:[%s1 + $0x48] sm:$0xff]
  %v24 = vld [vmem:[%s1 + $0x50] sm:$0xff]
  %v25 = vld [vmem:[%s1 + $0x58] sm:$0xff]
  %v26 = vld [vmem:[%s1 + $0x60] sm:$0xff]
  %v27 = vld [vmem:[%s1 + $0x68] sm:$0xff]
  %v28 = vld [vmem:[%s1 + $0x70] sm:$0xff]
  %v29 = vld [vmem:[%s1 + $0x78] sm:$0xff]
  %v30 = vld [vmem:[%s2] sm:$0x1]
  %v31 = vld [vmem:[%s0] sm:$0xff]
  %v32 = vld [vmem:[%s0 + $0x8] sm:$0xff]
  %v33 = vld [vmem:[%s0 + $0x10] sm:$0xff]
  %v34 = vld [vmem:[%s0 + $0x18] sm:$0xff]
  %v35 = vld [vmem:[%s0 + $0x20] sm:$0xff]
  %v36 = vld [vmem:[%s0 + $0x28] sm:$0xff]
  %v37 = vld [vmem:[%s0 + $0x30] sm:$0xff]
  %v38 = vld [vmem:[%s0 + $0x38] sm:$0xff]
  %v39 = vld [vmem:[%s0 + $0x40] sm:$0xff]
  %v40 = vld [vmem:[%s0 + $0x48] sm:$0xff]
  %v41 = vld [vmem:[%s0 + $0x50] sm:$0xff]
  %v42 = vld [vmem:[%s0 + $0x58] sm:$0xff]
  %v43 = vld [vmem:[%s0 + $0x60] sm:$0xff]
  %v44 = vld [vmem:[%s0 + $0x68] sm:$0xff]
  %v45 = vld [vmem:[%s0 + $0x70] sm:$0xff]
  %v46 = vld [vmem:[%s0 + $0x78] sm:$0xff]
  %v47 = vld [vmem:[%s0 + $0x80] sm:$0xff]
  %v48 = vld [vmem:[%s0 + $0x88] sm:$0xff]
  %v49 = vld [vmem:[%s0 + $0x90] sm:$0xff]
  %v50 = vld [vmem:[%s0 + $0x98] sm:$0xff]
  %v51 = vld [vmem:[%s0 + $0xa0] sm:$0xff]
  %v52 = vld [vmem:[%s0 + $0xa8] sm:$0xff]
  %v53 = vld [vmem:[%s0 + $0xb0] sm:$0xff]
  %v54 = vld [vmem:[%s0 + $0xb8] sm:$0xff]
  %v55 = vld [vmem:[%s0 + $0xc0] sm:$0xff]
  %v56 = vld [vmem:[%s0 + $0xc8] sm:$0xff]
  %v57 = vld [vmem:[%s0 + $0xd0] sm:$0xff]
  %v58 = vld [vmem:[%s0 + $0xd8] sm:$0xff]
  %v59 = vld [vmem:[%s0 + $0xe0] sm:$0xff]
  %v60 = vld [vmem:[%s0 + $0xe8] sm:$0xff]
  %v61 = vld [vmem:[%s0 + $0xf0] sm:$0xff]
  %v62 = vld [vmem:[%s0 + $0xf8] sm:$0xff]
  %v63 = vld [vmem:[%s0 + $0x100] sm:$0xff]
  %v64 = vld [vmem:[%s0 + $0x108] sm:$0xff]
  %v65 = vld [vmem:[%s0 + $0x110] sm:$0xff]
  %v66 = vld [vmem:[%s0 + $0x118] sm:$0xff]
  %v67 = vld [vmem:[%s0 + $0x120] sm:$0xff]
  %v68 = vld [vmem:[%s0 + $0x128] sm:$0xff]
  %v69 = vld [vmem:[%s0 + $0x130] sm:$0xff]
  %v70 = vld [vmem:[%s0 + $0x138] sm:$0xff]
  %v71 = vld [vmem:[%s0 + $0x140] sm:$0xff]
  %v72 = vld [vmem:[%s0 + $0x148] sm:$0xff]
  %v73 = vld [vmem:[%s0 + $0x150] sm:$0xff]
  %v74 = vld [vmem:[%s0 + $0x158] sm:$0xff]
  %v75 = vld [vmem:[%s0 + $0x160] sm:$0xff]
  %v76 = vld [vmem:[%s0 + $0x168] sm:$0xff]
  %v77 = vld [vmem:[%s0 + $0x170] sm:$0xff]
  %v78 = vld [vmem:[%s0 + $0x178] sm:$0xff]
  %v79 = vld [vmem:[%s0 + $0x180] sm:$0xff]
  %v81 = vperm.slane %v30, 0
  %83 = vmatpush.msra.mxu0 %v29
  %84 = vmatpush.msra.mxu0 %v28
  %85 = vmatpush.msra.mxu0 %v27
  %86 = vmatpush.msra.mxu0 %v26
  %87 = vmatpush.msra.mxu0 %v25
  %88 = vmatpush.msra.mxu0 %v24
  %89 = vmatpush.msra.mxu0 %v23
  %90 = vmatpush.msra.mxu0 %v22
  %91 = vmatpush.msra.mxu0 %v21
  %92 = vmatpush.msra.mxu0 %v20
  %93 = vmatpush.msra.mxu0 %v19
  %94 = vmatpush.msra.mxu0 %v18
  %95 = vmatpush.msra.mxu0 %v17
  %96 = vmatpush.msra.mxu0 %v16
  %97 = vmatpush.msra.mxu0 %v15
  %98 = vmatpush.msra.mxu0 %v14
  %99 = vmatmul.f32.gmra.mxu0 %v31
  %v100 = vpop.f32.mrf.mxu0
  %v101 = vadd.f32 %v81, %v100
  %102 = vmatmul.f32.gmra.mxu0 %v32
  %v103 = vpop.f32.mrf.mxu0
  %v104 = vadd.f32 %v81, %v103
  %105 = vmatmul.f32.gmra.mxu0 %v33
  %v106 = vpop.f32.mrf.mxu0
  %v107 = vadd.f32 %v81, %v106
  %108 = vmatmul.f32.gmra.mxu0 %v34
  %v109 = vpop.f32.mrf.mxu0
  %v110 = vadd.f32 %v81, %v109
  %111 = vmatmul.f32.gmra.mxu0 %v35
  %v112 = vpop.f32.mrf.mxu0
  %v113 = vadd.f32 %v81, %v112
  %114 = vmatmul.f32.gmra.mxu0 %v36
  %v115 = vpop.f32.mrf.mxu0
  %v116 = vadd.f32 %v81, %v115
  %117 = vmatmul.f32.gmra.mxu0 %v37
  %v118 = vpop.f32.mrf.mxu0
  %v119 = vadd.f32 %v81, %v118
  %120 = vmatmul.f32.gmra.mxu0 %v38
  %v121 = vpop.f32.mrf.mxu0
  %v122 = vadd.f32 %v81, %v121
  %123 = vmatmul.f32.gmra.mxu0 %v39
  %v124 = vpop.f32.mrf.mxu0
  %v125 = vadd.f32 %v81, %v124
  %126 = vmatmul.f32.gmra.mxu0 %v40
  %v127 = vpop.f32.mrf.mxu0
  %v128 = vadd.f32 %v81, %v127
  %129 = vmatmul.f32.gmra.mxu0 %v41
  %v130 = vpop.f32.mrf.mxu0
  %v131 = vadd.f32 %v81, %v130
  %132 = vmatmul.f32.gmra.mxu0 %v42
  %v133 = vpop.f32.mrf.mxu0
  %v134 = vadd.f32 %v81, %v133
  %135 = vmatmul.f32.gmra.mxu0 %v43
  %v136 = vpop.f32.mrf.mxu0
  %v137 = vadd.f32 %v81, %v136
  %138 = vmatmul.f32.gmra.mxu0 %v44
  %v139 = vpop.f32.mrf.mxu0
  %v140 = vadd.f32 %v81, %v139
  %141 = vmatmul.f32.gmra.mxu0 %v45
  %v142 = vpop.f32.mrf.mxu0
  %v143 = vadd.f32 %v81, %v142
  %144 = vmatmul.f32.gmra.mxu0 %v46
  %v145 = vpop.f32.mrf.mxu0
  %v146 = vadd.f32 %v81, %v145
  %147 = vmatmul.f32.gmra.mxu0 %v47
  %v148 = vpop.f32.mrf.mxu0
  %v149 = vadd.f32 %v81, %v148
  %150 = vmatmul.f32.gmra.mxu0 %v48
  %v151 = vpop.f32.mrf.mxu0
  %v152 = vadd.f32 %v81, %v151
  %153 = vmatmul.f32.gmra.mxu0 %v49
  %v154 = vpop.f32.mrf.mxu0
  %v155 = vadd.f32 %v81, %v154
  %156 = vmatmul.f32.gmra.mxu0 %v50
  %v157 = vpop.f32.mrf.mxu0
  %v158 = vadd.f32 %v81, %v157
  %159 = vmatmul.f32.gmra.mxu0 %v51
  %v160 = vpop.f32.mrf.mxu0
  %v161 = vadd.f32 %v81, %v160
  %162 = vmatmul.f32.gmra.mxu0 %v52
  %v163 = vpop.f32.mrf.mxu0
  %v164 = vadd.f32 %v81, %v163
  %165 = vmatmul.f32.gmra.mxu0 %v53
  %v166 = vpop.f32.mrf.mxu0
  %v167 = vadd.f32 %v81, %v166
  %168 = vmatmul.f32.gmra.mxu0 %v54
  %v169 = vpop.f32.mrf.mxu0
  %v170 = vadd.f32 %v81, %v169
  %171 = vmatmul.f32.gmra.mxu0 %v55
  %v172 = vpop.f32.mrf.mxu0
  %v173 = vadd.f32 %v81, %v172
  %174 = vmatmul.f32.gmra.mxu0 %v56
  %v175 = vpop.f32.mrf.mxu0
  %v176 = vadd.f32 %v81, %v175
  %177 = vmatmul.f32.gmra.mxu0 %v57
  %v178 = vpop.f32.mrf.mxu0
  %v179 = vadd.f32 %v81, %v178
  %180 = vmatmul.f32.gmra.mxu0 %v58
  %v181 = vpop.f32.mrf.mxu0
  %v182 = vadd.f32 %v81, %v181
  %183 = vmatmul.f32.gmra.mxu0 %v59
  %v184 = vpop.f32.mrf.mxu0
  %v185 = vadd.f32 %v81, %v184
  %186 = vmatmul.f32.gmra.mxu0 %v60
  %v187 = vpop.f32.mrf.mxu0
  %v188 = vadd.f32 %v81, %v187
  %189 = vmatmul.f32.gmra.mxu0 %v61
  %v190 = vpop.f32.mrf.mxu0
  %v191 = vadd.f32 %v81, %v190
  %192 = vmatmul.f32.gmra.mxu0 %v62
  %v193 = vpop.f32.mrf.mxu0
  %v194 = vadd.f32 %v81, %v193
  %195 = vmatmul.f32.gmra.mxu0 %v63
  %v196 = vpop.f32.mrf.mxu0
  %v197 = vadd.f32 %v81, %v196
  %198 = vmatmul.f32.gmra.mxu0 %v64
  %v199 = vpop.f32.mrf.mxu0
  %v200 = vadd.f32 %v81, %v199
  %201 = vmatmul.f32.gmra.mxu0 %v65
  %v202 = vpop.f32.mrf.mxu0
  %v203 = vadd.f32 %v81, %v202
  %204 = vmatmul.f32.gmra.mxu0 %v66
  %v205 = vpop.f32.mrf.mxu0
  %v206 = vadd.f32 %v81, %v205
  %207 = vmatmul.f32.gmra.mxu0 %v67
  %v208 = vpop.f32.mrf.mxu0
  %v209 = vadd.f32 %v81, %v208
  %210 = vmatmul.f32.gmra.mxu0 %v68
  %v211 = vpop.f32.mrf.mxu0
  %v212 = vadd.f32 %v81, %v211
  %213 = vmatmul.f32.gmra.mxu0 %v69
  %v214 = vpop.f32.mrf.mxu0
  %v215 = vadd.f32 %v81, %v214
  %216 = vmatmul.f32.gmra.mxu0 %v70
  %v217 = vpop.f32.mrf.mxu0
  %v218 = vadd.f32 %v81, %v217
  %219 = vmatmul.f32.gmra.mxu0 %v71
  %v220 = vpop.f32.mrf.mxu0
  %v221 = vadd.f32 %v81, %v220
  %222 = vmatmul.f32.gmra.mxu0 %v72
  %v223 = vpop.f32.mrf.mxu0
  %v224 = vadd.f32 %v81, %v223
  %225 = vmatmul.f32.gmra.mxu0 %v73
  %v226 = vpop.f32.mrf.mxu0
  %v227 = vadd.f32 %v81, %v226
  %228 = vmatmul.f32.gmra.mxu0 %v74
  %v229 = vpop.f32.mrf.mxu0
  %v230 = vadd.f32 %v81, %v229
  %231 = vmatmul.f32.gmra.mxu0 %v75
  %v232 = vpop.f32.mrf.mxu0
  %v233 = vadd.f32 %v81, %v232
  %234 = vmatmul.f32.gmra.mxu0 %v76
  %v235 = vpop.f32.mrf.mxu0
  %v236 = vadd.f32 %v81, %v235
  %237 = vmatmul.f32.gmra.mxu0 %v77
  %v238 = vpop.f32.mrf.mxu0
  %v239 = vadd.f32 %v81, %v238
  %240 = vmatmul.f32.gmra.mxu0 %v78
  %v241 = vpop.f32.mrf.mxu0
  %v242 = vadd.f32 %v81, %v241
  %243 = vmatmul.f32.gmra.mxu0 %v79
  %v244 = vpop.f32.mrf.mxu0
  %v245 = vadd.f32 %v81, %v244
  %246 = vdwg.mxu0
  %v247 = vmax.f32 %v101, 0.0
  %v248 = vmax.f32 %v104, 0.0
  %v249 = vmax.f32 %v107, 0.0
  %v250 = vmax.f32 %v110, 0.0
  %v251 = vmax.f32 %v113, 0.0
  %v252 = vmax.f32 %v116, 0.0
  %v253 = vmax.f32 %v119, 0.0
  %v254 = vmax.f32 %v122, 0.0
  %v255 = vmax.f32 %v125, 0.0
  %v256 = vmax.f32 %v128, 0.0
  %v257 = vmax.f32 %v131, 0.0
  %v258 = vmax.f32 %v134, 0.0
  %v259 = vmax.f32 %v137, 0.0
  %v260 = vmax.f32 %v140, 0.0
  %v261 = vmax.f32 %v143, 0.0
  %v262 = vmax.f32 %v146, 0.0
  %v263 = vmax.f32 %v149, 0.0
  %v264 = vmax.f32 %v152, 0.0
  %v265 = vmax.f32 %v155, 0.0
  %v266 = vmax.f32 %v158, 0.0
  %v267 = vmax.f32 %v161, 0.0
  %v268 = vmax.f32 %v164, 0.0
  %v269 = vmax.f32 %v167, 0.0
  %v270 = vmax.f32 %v170, 0.0
  %v271 = vmax.f32 %v173, 0.0
  %v272 = vmax.f32 %v176, 0.0
  %v273 = vmax.f32 %v179, 0.0
  %v274 = vmax.f32 %v182, 0.0
  %v275 = vmax.f32 %v185, 0.0
  %v276 = vmax.f32 %v188, 0.0
  %v277 = vmax.f32 %v191, 0.0
  %v278 = vmax.f32 %v194, 0.0
  %v279 = vmax.f32 %v197, 0.0
  %v280 = vmax.f32 %v200, 0.0
  %v281 = vmax.f32 %v203, 0.0
  %v282 = vmax.f32 %v206, 0.0
  %v283 = vmax.f32 %v209, 0.0
  %v284 = vmax.f32 %v212, 0.0
  %v285 = vmax.f32 %v215, 0.0
  %v286 = vmax.f32 %v218, 0.0
  %v287 = vmax.f32 %v221, 0.0
  %v288 = vmax.f32 %v224, 0.0
  %v289 = vmax.f32 %v227, 0.0
  %v290 = vmax.f32 %v230, 0.0
  %v291 = vmax.f32 %v233, 0.0
  %v292 = vmax.f32 %v236, 0.0
  %v293 = vmax.f32 %v239, 0.0
  %v294 = vmax.f32 %v242, 0.0
  %v295 = vmax.f32 %v245, 0.0
  %s296 = scalar_lea.vmem %s0, 392
  %v297 = vld [vmem:[%s296] sm:$0xff]
  %v298 = vld [vmem:[%s296 + $0x8] sm:$0xff]
  %v299 = vld [vmem:[%s296 + $0x10] sm:$0xff]
  %v300 = vld [vmem:[%s296 + $0x18] sm:$0xff]
  %v301 = vld [vmem:[%s296 + $0x20] sm:$0xff]
  %v302 = vld [vmem:[%s296 + $0x28] sm:$0xff]
  %v303 = vld [vmem:[%s296 + $0x30] sm:$0xff]
  %v304 = vld [vmem:[%s296 + $0x38] sm:$0xff]
  %v305 = vld [vmem:[%s296 + $0x40] sm:$0xff]
  %v306 = vld [vmem:[%s296 + $0x48] sm:$0xff]
  %v307 = vld [vmem:[%s296 + $0x50] sm:$0xff]
  %v308 = vld [vmem:[%s296 + $0x58] sm:$0xff]
  %v309 = vld [vmem:[%s296 + $0x60] sm:$0xff]
  %v310 = vld [vmem:[%s296 + $0x68] sm:$0xff]
  %v311 = vld [vmem:[%s296 + $0x70] sm:$0xff]
  %v312 = vld [vmem:[%s296 + $0x78] sm:$0xff]
  %v313 = vld [vmem:[%s296 + $0x80] sm:$0xff]
  %v314 = vld [vmem:[%s296 + $0x88] sm:$0xff]
  %v315 = vld [vmem:[%s296 + $0x90] sm:$0xff]
  %v316 = vld [vmem:[%s296 + $0x98] sm:$0xff]
  %v317 = vld [vmem:[%s296 + $0xa0] sm:$0xff]
  %v318 = vld [vmem:[%s296 + $0xa8] sm:$0xff]
  %v319 = vld [vmem:[%s296 + $0xb0] sm:$0xff]
  %v320 = vld [vmem:[%s296 + $0xb8] sm:$0xff]
  %v321 = vld [vmem:[%s296 + $0xc0] sm:$0xff]
  %v322 = vld [vmem:[%s296 + $0xc8] sm:$0xff]
  %v323 = vld [vmem:[%s296 + $0xd0] sm:$0xff]
  %v324 = vld [vmem:[%s296 + $0xd8] sm:$0xff]
  %v325 = vld [vmem:[%s296 + $0xe0] sm:$0xff]
  %v326 = vld [vmem:[%s296 + $0xe8] sm:$0xff]
  %v327 = vld [vmem:[%s296 + $0xf0] sm:$0xff]
  %v328 = vld [vmem:[%s296 + $0xf8] sm:$0xff]
  %v329 = vld [vmem:[%s296 + $0x100] sm:$0xff]
  %v330 = vld [vmem:[%s296 + $0x108] sm:$0xff]
  %v331 = vld [vmem:[%s296 + $0x110] sm:$0xff]
  %v332 = vld [vmem:[%s296 + $0x118] sm:$0xff]
  %v333 = vld [vmem:[%s296 + $0x120] sm:$0xff]
  %v334 = vld [vmem:[%s296 + $0x128] sm:$0xff]
  %v335 = vld [vmem:[%s296 + $0x130] sm:$0xff]
  %v336 = vld [vmem:[%s296 + $0x138] sm:$0xff]
  %v337 = vld [vmem:[%s296 + $0x140] sm:$0xff]
  %v338 = vld [vmem:[%s296 + $0x148] sm:$0xff]
  %v339 = vld [vmem:[%s296 + $0x150] sm:$0xff]
  %v340 = vld [vmem:[%s296 + $0x158] sm:$0xff]
  %v341 = vld [vmem:[%s296 + $0x160] sm:$0xff]
  %v342 = vld [vmem:[%s296 + $0x168] sm:$0xff]
  %v343 = vld [vmem:[%s296 + $0x170] sm:$0xff]
  %v344 = vld [vmem:[%s296 + $0x178] sm:$0xff]
  %v345 = vld [vmem:[%s296 + $0x180] sm:$0xff]
  %346 = vmatpush.msra.mxu0 %v29
  %347 = vmatpush.msra.mxu0 %v28
  %348 = vmatpush.msra.mxu0 %v27
  %349 = vmatpush.msra.mxu0 %v26
  %350 = vmatpush.msra.mxu0 %v25
  %351 = vmatpush.msra.mxu0 %v24
  %352 = vmatpush.msra.mxu0 %v23
  %353 = vmatpush.msra.mxu0 %v22
  %354 = vmatpush.msra.mxu0 %v21
  %355 = vmatpush.msra.mxu0 %v20
  %356 = vmatpush.msra.mxu0 %v19
  %357 = vmatpush.msra.mxu0 %v18
  %358 = vmatpush.msra.mxu0 %v17
  %359 = vmatpush.msra.mxu0 %v16
  %360 = vmatpush.msra.mxu0 %v15
  %361 = vmatpush.msra.mxu0 %v14
  %362 = vmatmul.f32.gmra.mxu0 %v297
  %v363 = vpop.f32.mrf.mxu0
  %v364 = vadd.f32 %v81, %v363
  %365 = vmatmul.f32.gmra.mxu0 %v298
  %v366 = vpop.f32.mrf.mxu0
  %v367 = vadd.f32 %v81, %v366
  %368 = vmatmul.f32.gmra.mxu0 %v299
  %v369 = vpop.f32.mrf.mxu0
  %v370 = vadd.f32 %v81, %v369
  %371 = vmatmul.f32.gmra.mxu0 %v300
  %v372 = vpop.f32.mrf.mxu0
  %v373 = vadd.f32 %v81, %v372
  %374 = vmatmul.f32.gmra.mxu0 %v301
  %v375 = vpop.f32.mrf.mxu0
  %v376 = vadd.f32 %v81, %v375
  %377 = vmatmul.f32.gmra.mxu0 %v302
  %v378 = vpop.f32.mrf.mxu0
  %v379 = vadd.f32 %v81, %v378
  %380 = vmatmul.f32.gmra.mxu0 %v303
  %v381 = vpop.f32.mrf.mxu0
  %v382 = vadd.f32 %v81, %v381
  %383 = vmatmul.f32.gmra.mxu0 %v304
  %v384 = vpop.f32.mrf.mxu0
  %v385 = vadd.f32 %v81, %v384
  %386 = vmatmul.f32.gmra.mxu0 %v305
  %v387 = vpop.f32.mrf.mxu0
  %v388 = vadd.f32 %v81, %v387
  %389 = vmatmul.f32.gmra.mxu0 %v306
  %v390 = vpop.f32.mrf.mxu0
  %v391 = vadd.f32 %v81, %v390
  %392 = vmatmul.f32.gmra.mxu0 %v307
  %v393 = vpop.f32.mrf.mxu0
  %v394 = vadd.f32 %v81, %v393
  %395 = vmatmul.f32.gmra.mxu0 %v308
  %v396 = vpop.f32.mrf.mxu0
  %v397 = vadd.f32 %v81, %v396
  %398 = vmatmul.f32.gmra.mxu0 %v309
  %v399 = vpop.f32.mrf.mxu0
  %v400 = vadd.f32 %v81, %v399
  %401 = vmatmul.f32.gmra.mxu0 %v310
  %v402 = vpop.f32.mrf.mxu0
  %v403 = vadd.f32 %v81, %v402
  %404 = vmatmul.f32.gmra.mxu0 %v311
  %v405 = vpop.f32.mrf.mxu0
  %v406 = vadd.f32 %v81, %v405
  %407 = vmatmul.f32.gmra.mxu0 %v312
  %v408 = vpop.f32.mrf.mxu0
  %v409 = vadd.f32 %v81, %v408
  %410 = vmatmul.f32.gmra.mxu0 %v313
  %v411 = vpop.f32.mrf.mxu0
  %v412 = vadd.f32 %v81, %v411
  %413 = vmatmul.f32.gmra.mxu0 %v314
  %v414 = vpop.f32.mrf.mxu0
  %v415 = vadd.f32 %v81, %v414
  %416 = vmatmul.f32.gmra.mxu0 %v315
  %v417 = vpop.f32.mrf.mxu0
  %v418 = vadd.f32 %v81, %v417
  %419 = vmatmul.f32.gmra.mxu0 %v316
  %v420 = vpop.f32.mrf.mxu0
  %v421 = vadd.f32 %v81, %v420
  %422 = vmatmul.f32.gmra.mxu0 %v317
  %v423 = vpop.f32.mrf.mxu0
  %v424 = vadd.f32 %v81, %v423
  %425 = vmatmul.f32.gmra.mxu0 %v318
  %v426 = vpop.f32.mrf.mxu0
  %v427 = vadd.f32 %v81, %v426
  %428 = vmatmul.f32.gmra.mxu0 %v319
  %v429 = vpop.f32.mrf.mxu0
  %v430 = vadd.f32 %v81, %v429
  %431 = vmatmul.f32.gmra.mxu0 %v320
  %v432 = vpop.f32.mrf.mxu0
  %v433 = vadd.f32 %v81, %v432
  %434 = vmatmul.f32.gmra.mxu0 %v321
  %v435 = vpop.f32.mrf.mxu0
  %v436 = vadd.f32 %v81, %v435
  %437 = vmatmul.f32.gmra.mxu0 %v322
  %v438 = vpop.f32.mrf.mxu0
  %v439 = vadd.f32 %v81, %v438
  %440 = vmatmul.f32.gmra.mxu0 %v323
  %v441 = vpop.f32.mrf.mxu0
  %v442 = vadd.f32 %v81, %v441
  %443 = vmatmul.f32.gmra.mxu0 %v324
  %v444 = vpop.f32.mrf.mxu0
  %v445 = vadd.f32 %v81, %v444
  %446 = vmatmul.f32.gmra.mxu0 %v325
  %v447 = vpop.f32.mrf.mxu0
  %v448 = vadd.f32 %v81, %v447
  %449 = vmatmul.f32.gmra.mxu0 %v326
  %v450 = vpop.f32.mrf.mxu0
  %v451 = vadd.f32 %v81, %v450
  %452 = vmatmul.f32.gmra.mxu0 %v327
  %v453 = vpop.f32.mrf.mxu0
  %v454 = vadd.f32 %v81, %v453
  %455 = vmatmul.f32.gmra.mxu0 %v328
  %v456 = vpop.f32.mrf.mxu0
  %v457 = vadd.f32 %v81, %v456
  %458 = vmatmul.f32.gmra.mxu0 %v329
  %v459 = vpop.f32.mrf.mxu0
  %v460 = vadd.f32 %v81, %v459
  %461 = vmatmul.f32.gmra.mxu0 %v330
  %v462 = vpop.f32.mrf.mxu0
  %v463 = vadd.f32 %v81, %v462
  %464 = vmatmul.f32.gmra.mxu0 %v331
  %v465 = vpop.f32.mrf.mxu0
  %v466 = vadd.f32 %v81, %v465
  %467 = vmatmul.f32.gmra.mxu0 %v332
  %v468 = vpop.f32.mrf.mxu0
  %v469 = vadd.f32 %v81, %v468
  %470 = vmatmul.f32.gmra.mxu0 %v333
  %v471 = vpop.f32.mrf.mxu0
  %v472 = vadd.f32 %v81, %v471
  %473 = vmatmul.f32.gmra.mxu0 %v334
  %v474 = vpop.f32.mrf.mxu0
  %v475 = vadd.f32 %v81, %v474
  %476 = vmatmul.f32.gmra.mxu0 %v335
  %v477 = vpop.f32.mrf.mxu0
  %v478 = vadd.f32 %v81, %v477
  %479 = vmatmul.f32.gmra.mxu0 %v336
  %v480 = vpop.f32.mrf.mxu0
  %v481 = vadd.f32 %v81, %v480
  %482 = vmatmul.f32.gmra.mxu0 %v337
  %v483 = vpop.f32.mrf.mxu0
  %v484 = vadd.f32 %v81, %v483
  %485 = vmatmul.f32.gmra.mxu0 %v338
  %v486 = vpop.f32.mrf.mxu0
  %v487 = vadd.f32 %v81, %v486
  %488 = vmatmul.f32.gmra.mxu0 %v339
  %v489 = vpop.f32.mrf.mxu0
  %v490 = vadd.f32 %v81, %v489
  %491 = vmatmul.f32.gmra.mxu0 %v340
  %v492 = vpop.f32.mrf.mxu0
  %v493 = vadd.f32 %v81, %v492
  %494 = vmatmul.f32.gmra.mxu0 %v341
  %v495 = vpop.f32.mrf.mxu0
  %v496 = vadd.f32 %v81, %v495
  %497 = vmatmul.f32.gmra.mxu0 %v342
  %v498 = vpop.f32.mrf.mxu0
  %v499 = vadd.f32 %v81, %v498
  %500 = vmatmul.f32.gmra.mxu0 %v343
  %v501 = vpop.f32.mrf.mxu0
  %v502 = vadd.f32 %v81, %v501
  %503 = vmatmul.f32.gmra.mxu0 %v344
  %v504 = vpop.f32.mrf.mxu0
  %v505 = vadd.f32 %v81, %v504
  %506 = vmatmul.f32.gmra.mxu0 %v345
  %v507 = vpop.f32.mrf.mxu0
  %v508 = vadd.f32 %v81, %v507
  %509 = vdwg.mxu0
  %v510 = vmax.f32 %v364, 0.0
  %v511 = vmax.f32 %v367, 0.0
  %v512 = vmax.f32 %v370, 0.0
  %v513 = vmax.f32 %v373, 0.0
  %v514 = vmax.f32 %v376, 0.0
  %v515 = vmax.f32 %v379, 0.0
  %v516 = vmax.f32 %v382, 0.0
  %v517 = vmax.f32 %v385, 0.0
  %v518 = vmax.f32 %v388, 0.0
  %v519 = vmax.f32 %v391, 0.0
  %v520 = vmax.f32 %v394, 0.0
  %v521 = vmax.f32 %v397, 0.0
  %v522 = vmax.f32 %v400, 0.0
  %v523 = vmax.f32 %v403, 0.0
  %v524 = vmax.f32 %v406, 0.0
  %v525 = vmax.f32 %v409, 0.0
  %v526 = vmax.f32 %v412, 0.0
  %v527 = vmax.f32 %v415, 0.0
  %v528 = vmax.f32 %v418, 0.0
  %v529 = vmax.f32 %v421, 0.0
  %v530 = vmax.f32 %v424, 0.0
  %v531 = vmax.f32 %v427, 0.0
  %v532 = vmax.f32 %v430, 0.0
  %v533 = vmax.f32 %v433, 0.0
  %v534 = vmax.f32 %v436, 0.0
  %v535 = vmax.f32 %v439, 0.0
  %v536 = vmax.f32 %v442, 0.0
  %v537 = vmax.f32 %v445, 0.0
  %v538 = vmax.f32 %v448, 0.0
  %v539 = vmax.f32 %v451, 0.0
  %v540 = vmax.f32 %v454, 0.0
  %v541 = vmax.f32 %v457, 0.0
  %v542 = vmax.f32 %v460, 0.0
  %v543 = vmax.f32 %v463, 0.0
  %v544 = vmax.f32 %v466, 0.0
  %v545 = vmax.f32 %v469, 0.0
  %v546 = vmax.f32 %v472, 0.0
  %v547 = vmax.f32 %v475, 0.0
  %v548 = vmax.f32 %v478, 0.0
  %v549 = vmax.f32 %v481, 0.0
  %v550 = vmax.f32 %v484, 0.0
  %v551 = vmax.f32 %v487, 0.0
  %v552 = vmax.f32 %v490, 0.0
  %v553 = vmax.f32 %v493, 0.0
  %v554 = vmax.f32 %v496, 0.0
  %v555 = vmax.f32 %v499, 0.0
  %v556 = vmax.f32 %v502, 0.0
  %v557 = vmax.f32 %v505, 0.0
  %v558 = vmax.f32 %v508, 0.0
  %v559 = vmax.f32 %v247, %v510
  %v560 = vmax.f32 %v248, %v511
  %v561 = vmax.f32 %v249, %v512
  %v562 = vmax.f32 %v250, %v513
  %v563 = vmax.f32 %v251, %v514
  %v564 = vmax.f32 %v252, %v515
  %v565 = vmax.f32 %v253, %v516
  %v566 = vmax.f32 %v254, %v517
  %v567 = vmax.f32 %v255, %v518
  %v568 = vmax.f32 %v256, %v519
  %v569 = vmax.f32 %v257, %v520
  %v570 = vmax.f32 %v258, %v521
  %v571 = vmax.f32 %v259, %v522
  %v572 = vmax.f32 %v260, %v523
  %v573 = vmax.f32 %v261, %v524
  %v574 = vmax.f32 %v262, %v525
  %v575 = vmax.f32 %v263, %v526
  %v576 = vmax.f32 %v264, %v527
  %v577 = vmax.f32 %v265, %v528
  %v578 = vmax.f32 %v266, %v529
  %v579 = vmax.f32 %v267, %v530
  %v580 = vmax.f32 %v268, %v531
  %v581 = vmax.f32 %v269, %v532
  %v582 = vmax.f32 %v270, %v533
  %v583 = vmax.f32 %v271, %v534
  %v584 = vmax.f32 %v272, %v535
  %v585 = vmax.f32 %v273, %v536
  %v586 = vmax.f32 %v274, %v537
  %v587 = vmax.f32 %v275, %v538
  %v588 = vmax.f32 %v276, %v539
  %v589 = vmax.f32 %v277, %v540
  %v590 = vmax.f32 %v278, %v541
  %v591 = vmax.f32 %v279, %v542
  %v592 = vmax.f32 %v280, %v543
  %v593 = vmax.f32 %v281, %v544
  %v594 = vmax.f32 %v282, %v545
  %v595 = vmax.f32 %v283, %v546
  %v596 = vmax.f32 %v284, %v547
  %v597 = vmax.f32 %v285, %v548
  %v598 = vmax.f32 %v286, %v549
  %v599 = vmax.f32 %v287, %v550
  %v600 = vmax.f32 %v288, %v551
  %v601 = vmax.f32 %v289, %v552
  %v602 = vmax.f32 %v290, %v553
  %v603 = vmax.f32 %v291, %v554
  %v604 = vmax.f32 %v292, %v555
  %v605 = vmax.f32 %v293, %v556
  %v606 = vmax.f32 %v294, %v557
  %v607 = vmax.f32 %v295, %v558
  %s608 = scalar_lea.vmem %s0, 784
  %v609 = vld [vmem:[%s608] sm:$0xff]
  %v610 = vld [vmem:[%s608 + $0x8] sm:$0xff]
  %v611 = vld [vmem:[%s608 + $0x10] sm:$0xff]
  %v612 = vld [vmem:[%s608 + $0x18] sm:$0xff]
  %v613 = vld [vmem:[%s608 + $0x20] sm:$0xff]
  %v614 = vld [vmem:[%s608 + $0x28] sm:$0xff]
  %v615 = vld [vmem:[%s608 + $0x30] sm:$0xff]
  %v616 = vld [vmem:[%s608 + $0x38] sm:$0xff]
  %v617 = vld [vmem:[%s608 + $0x40] sm:$0xff]
  %v618 = vld [vmem:[%s608 + $0x48] sm:$0xff]
  %v619 = vld [vmem:[%s608 + $0x50] sm:$0xff]
  %v620 = vld [vmem:[%s608 + $0x58] sm:$0xff]
  %v621 = vld [vmem:[%s608 + $0x60] sm:$0xff]
  %v622 = vld [vmem:[%s608 + $0x68] sm:$0xff]
  %v623 = vld [vmem:[%s608 + $0x70] sm:$0xff]
  %v624 = vld [vmem:[%s608 + $0x78] sm:$0xff]
  %v625 = vld [vmem:[%s608 + $0x80] sm:$0xff]
  %v626 = vld [vmem:[%s608 + $0x88] sm:$0xff]
  %v627 = vld [vmem:[%s608 + $0x90] sm:$0xff]
  %v628 = vld [vmem:[%s608 + $0x98] sm:$0xff]
  %v629 = vld [vmem:[%s608 + $0xa0] sm:$0xff]
  %v630 = vld [vmem:[%s608 + $0xa8] sm:$0xff]
  %v631 = vld [vmem:[%s608 + $0xb0] sm:$0xff]
  %v632 = vld [vmem:[%s608 + $0xb8] sm:$0xff]
  %v633 = vld [vmem:[%s608 + $0xc0] sm:$0xff]
  %v634 = vld [vmem:[%s608 + $0xc8] sm:$0xff]
  %v635 = vld [vmem:[%s608 + $0xd0] sm:$0xff]
  %v636 = vld [vmem:[%s608 + $0xd8] sm:$0xff]
  %v637 = vld [vmem:[%s608 + $0xe0] sm:$0xff]
  %v638 = vld [vmem:[%s608 + $0xe8] sm:$0xff]
  %v639 = vld [vmem:[%s608 + $0xf0] sm:$0xff]
  %v640 = vld [vmem:[%s608 + $0xf8] sm:$0xff]
  %v641 = vld [vmem:[%s608 + $0x100] sm:$0xff]
  %v642 = vld [vmem:[%s608 + $0x108] sm:$0xff]
  %v643 = vld [vmem:[%s608 + $0x110] sm:$0xff]
  %v644 = vld [vmem:[%s608 + $0x118] sm:$0xff]
  %v645 = vld [vmem:[%s608 + $0x120] sm:$0xff]
  %v646 = vld [vmem:[%s608 + $0x128] sm:$0xff]
  %v647 = vld [vmem:[%s608 + $0x130] sm:$0xff]
  %v648 = vld [vmem:[%s608 + $0x138] sm:$0xff]
  %v649 = vld [vmem:[%s608 + $0x140] sm:$0xff]
  %v650 = vld [vmem:[%s608 + $0x148] sm:$0xff]
  %v651 = vld [vmem:[%s608 + $0x150] sm:$0xff]
  %v652 = vld [vmem:[%s608 + $0x158] sm:$0xff]
  %v653 = vld [vmem:[%s608 + $0x160] sm:$0xff]
  %v654 = vld [vmem:[%s608 + $0x168] sm:$0xff]
  %v655 = vld [vmem:[%s608 + $0x170] sm:$0xff]
  %v656 = vld [vmem:[%s608 + $0x178] sm:$0xff]
  %v657 = vld [vmem:[%s608 + $0x180] sm:$0xff]
  %658 = vmatpush.msra.mxu0 %v29
  %659 = vmatpush.msra.mxu0 %v28
  %660 = vmatpush.msra.mxu0 %v27
  %661 = vmatpush.msra.mxu0 %v26
  %662 = vmatpush.msra.mxu0 %v25
  %663 = vmatpush.msra.mxu0 %v24
  %664 = vmatpush.msra.mxu0 %v23
  %665 = vmatpush.msra.mxu0 %v22
  %666 = vmatpush.msra.mxu0 %v21
  %667 = vmatpush.msra.mxu0 %v20
  %668 = vmatpush.msra.mxu0 %v19
  %669 = vmatpush.msra.mxu0 %v18
  %670 = vmatpush.msra.mxu0 %v17
  %671 = vmatpush.msra.mxu0 %v16
  %672 = vmatpush.msra.mxu0 %v15
  %673 = vmatpush.msra.mxu0 %v14
  %674 = vmatmul.f32.gmra.mxu0 %v609
  %v675 = vpop.f32.mrf.mxu0
  %v676 = vadd.f32 %v81, %v675
  %677 = vmatmul.f32.gmra.mxu0 %v610
  %v678 = vpop.f32.mrf.mxu0
  %v679 = vadd.f32 %v81, %v678
  %680 = vmatmul.f32.gmra.mxu0 %v611
  %v681 = vpop.f32.mrf.mxu0
  %v682 = vadd.f32 %v81, %v681
  %683 = vmatmul.f32.gmra.mxu0 %v612
  %v684 = vpop.f32.mrf.mxu0
  %v685 = vadd.f32 %v81, %v684
  %686 = vmatmul.f32.gmra.mxu0 %v613
  %v687 = vpop.f32.mrf.mxu0
  %v688 = vadd.f32 %v81, %v687
  %689 = vmatmul.f32.gmra.mxu0 %v614
  %v690 = vpop.f32.mrf.mxu0
  %v691 = vadd.f32 %v81, %v690
  %692 = vmatmul.f32.gmra.mxu0 %v615
  %v693 = vpop.f32.mrf.mxu0
  %v694 = vadd.f32 %v81, %v693
  %695 = vmatmul.f32.gmra.mxu0 %v616
  %v696 = vpop.f32.mrf.mxu0
  %v697 = vadd.f32 %v81, %v696
  %698 = vmatmul.f32.gmra.mxu0 %v617
  %v699 = vpop.f32.mrf.mxu0
  %v700 = vadd.f32 %v81, %v699
  %701 = vmatmul.f32.gmra.mxu0 %v618
  %v702 = vpop.f32.mrf.mxu0
  %v703 = vadd.f32 %v81, %v702
  %704 = vmatmul.f32.gmra.mxu0 %v619
  %v705 = vpop.f32.mrf.mxu0
  %v706 = vadd.f32 %v81, %v705
  %707 = vmatmul.f32.gmra.mxu0 %v620
  %v708 = vpop.f32.mrf.mxu0
  %v709 = vadd.f32 %v81, %v708
  %710 = vmatmul.f32.gmra.mxu0 %v621
  %v711 = vpop.f32.mrf.mxu0
  %v712 = vadd.f32 %v81, %v711
  %713 = vmatmul.f32.gmra.mxu0 %v622
  %v714 = vpop.f32.mrf.mxu0
  %v715 = vadd.f32 %v81, %v714
  %716 = vmatmul.f32.gmra.mxu0 %v623
  %v717 = vpop.f32.mrf.mxu0
  %v718 = vadd.f32 %v81, %v717
  %719 = vmatmul.f32.gmra.mxu0 %v624
  %v720 = vpop.f32.mrf.mxu0
  %v721 = vadd.f32 %v81, %v720
  %722 = vmatmul.f32.gmra.mxu0 %v625
  %v723 = vpop.f32.mrf.mxu0
  %v724 = vadd.f32 %v81, %v723
  %725 = vmatmul.f32.gmra.mxu0 %v626
  %v726 = vpop.f32.mrf.mxu0
  %v727 = vadd.f32 %v81, %v726
  %728 = vmatmul.f32.gmra.mxu0 %v627
  %v729 = vpop.f32.mrf.mxu0
  %v730 = vadd.f32 %v81, %v729
  %731 = vmatmul.f32.gmra.mxu0 %v628
  %v732 = vpop.f32.mrf.mxu0
  %v733 = vadd.f32 %v81, %v732
  %734 = vmatmul.f32.gmra.mxu0 %v629
  %v735 = vpop.f32.mrf.mxu0
  %v736 = vadd.f32 %v81, %v735
  %737 = vmatmul.f32.gmra.mxu0 %v630
  %v738 = vpop.f32.mrf.mxu0
  %v739 = vadd.f32 %v81, %v738
  %740 = vmatmul.f32.gmra.mxu0 %v631
  %v741 = vpop.f32.mrf.mxu0
  %v742 = vadd.f32 %v81, %v741
  %743 = vmatmul.f32.gmra.mxu0 %v632
  %v744 = vpop.f32.mrf.mxu0
  %v745 = vadd.f32 %v81, %v744
  %746 = vmatmul.f32.gmra.mxu0 %v633
  %v747 = vpop.f32.mrf.mxu0
  %v748 = vadd.f32 %v81, %v747
  %749 = vmatmul.f32.gmra.mxu0 %v634
  %v750 = vpop.f32.mrf.mxu0
  %v751 = vadd.f32 %v81, %v750
  %752 = vmatmul.f32.gmra.mxu0 %v635
  %v753 = vpop.f32.mrf.mxu0
  %v754 = vadd.f32 %v81, %v753
  %755 = vmatmul.f32.gmra.mxu0 %v636
  %v756 = vpop.f32.mrf.mxu0
  %v757 = vadd.f32 %v81, %v756
  %758 = vmatmul.f32.gmra.mxu0 %v637
  %v759 = vpop.f32.mrf.mxu0
  %v760 = vadd.f32 %v81, %v759
  %761 = vmatmul.f32.gmra.mxu0 %v638
  %v762 = vpop.f32.mrf.mxu0
  %v763 = vadd.f32 %v81, %v762
  %764 = vmatmul.f32.gmra.mxu0 %v639
  %v765 = vpop.f32.mrf.mxu0
  %v766 = vadd.f32 %v81, %v765
  %767 = vmatmul.f32.gmra.mxu0 %v640
  %v768 = vpop.f32.mrf.mxu0
  %v769 = vadd.f32 %v81, %v768
  %770 = vmatmul.f32.gmra.mxu0 %v641
  %v771 = vpop.f32.mrf.mxu0
  %v772 = vadd.f32 %v81, %v771
  %773 = vmatmul.f32.gmra.mxu0 %v642
  %v774 = vpop.f32.mrf.mxu0
  %v775 = vadd.f32 %v81, %v774
  %776 = vmatmul.f32.gmra.mxu0 %v643
  %v777 = vpop.f32.mrf.mxu0
  %v778 = vadd.f32 %v81, %v777
  %779 = vmatmul.f32.gmra.mxu0 %v644
  %v780 = vpop.f32.mrf.mxu0
  %v781 = vadd.f32 %v81, %v780
  %782 = vmatmul.f32.gmra.mxu0 %v645
  %v783 = vpop.f32.mrf.mxu0
  %v784 = vadd.f32 %v81, %v783
  %785 = vmatmul.f32.gmra.mxu0 %v646
  %v786 = vpop.f32.mrf.mxu0
  %v787 = vadd.f32 %v81, %v786
  %788 = vmatmul.f32.gmra.mxu0 %v647
  %v789 = vpop.f32.mrf.mxu0
  %v790 = vadd.f32 %v81, %v789
  %791 = vmatmul.f32.gmra.mxu0 %v648
  %v792 = vpop.f32.mrf.mxu0
  %v793 = vadd.f32 %v81, %v792
  %794 = vmatmul.f32.gmra.mxu0 %v649
  %v795 = vpop.f32.mrf.mxu0
  %v796 = vadd.f32 %v81, %v795
  %797 = vmatmul.f32.gmra.mxu0 %v650
  %v798 = vpop.f32.mrf.mxu0
  %v799 = vadd.f32 %v81, %v798
  %800 = vmatmul.f32.gmra.mxu0 %v651
  %v801 = vpop.f32.mrf.mxu0
  %v802 = vadd.f32 %v81, %v801
  %803 = vmatmul.f32.gmra.mxu0 %v652
  %v804 = vpop.f32.mrf.mxu0
  %v805 = vadd.f32 %v81, %v804
  %806 = vmatmul.f32.gmra.mxu0 %v653
  %v807 = vpop.f32.mrf.mxu0
  %v808 = vadd.f32 %v81, %v807
  %809 = vmatmul.f32.gmra.mxu0 %v654
  %v810 = vpop.f32.mrf.mxu0
  %v811 = vadd.f32 %v81, %v810
  %812 = vmatmul.f32.gmra.mxu0 %v655
  %v813 = vpop.f32.mrf.mxu0
  %v814 = vadd.f32 %v81, %v813
  %815 = vmatmul.f32.gmra.mxu0 %v656
  %v816 = vpop.f32.mrf.mxu0
  %v817 = vadd.f32 %v81, %v816
  %818 = vmatmul.f32.gmra.mxu0 %v657
  %v819 = vpop.f32.mrf.mxu0
  %v820 = vadd.f32 %v81, %v819
  %821 = vdwg.mxu0
  %v822 = vmax.f32 %v676, 0.0
  %v823 = vmax.f32 %v679, 0.0
  %v824 = vmax.f32 %v682, 0.0
  %v825 = vmax.f32 %v685, 0.0
  %v826 = vmax.f32 %v688, 0.0
  %v827 = vmax.f32 %v691, 0.0
  %v828 = vmax.f32 %v694, 0.0
  %v829 = vmax.f32 %v697, 0.0
  %v830 = vmax.f32 %v700, 0.0
  %v831 = vmax.f32 %v703, 0.0
  %v832 = vmax.f32 %v706, 0.0
  %v833 = vmax.f32 %v709, 0.0
  %v834 = vmax.f32 %v712, 0.0
  %v835 = vmax.f32 %v715, 0.0
  %v836 = vmax.f32 %v718, 0.0
  %v837 = vmax.f32 %v721, 0.0
  %v838 = vmax.f32 %v724, 0.0
  %v839 = vmax.f32 %v727, 0.0
  %v840 = vmax.f32 %v730, 0.0
  %v841 = vmax.f32 %v733, 0.0
  %v842 = vmax.f32 %v736, 0.0
  %v843 = vmax.f32 %v739, 0.0
  %v844 = vmax.f32 %v742, 0.0
  %v845 = vmax.f32 %v745, 0.0
  %v846 = vmax.f32 %v748, 0.0
  %v847 = vmax.f32 %v751, 0.0
  %v848 = vmax.f32 %v754, 0.0
  %v849 = vmax.f32 %v757, 0.0
  %v850 = vmax.f32 %v760, 0.0
  %v851 = vmax.f32 %v763, 0.0
  %v852 = vmax.f32 %v766, 0.0
  %v853 = vmax.f32 %v769, 0.0
  %v854 = vmax.f32 %v772, 0.0
  %v855 = vmax.f32 %v775, 0.0
  %v856 = vmax.f32 %v778, 0.0
  %v857 = vmax.f32 %v781, 0.0
  %v858 = vmax.f32 %v784, 0.0
  %v859 = vmax.f32 %v787, 0.0
  %v860 = vmax.f32 %v790, 0.0
  %v861 = vmax.f32 %v793, 0.0
  %v862 = vmax.f32 %v796, 0.0
  %v863 = vmax.f32 %v799, 0.0
  %v864 = vmax.f32 %v802, 0.0
  %v865 = vmax.f32 %v805, 0.0
  %v866 = vmax.f32 %v808, 0.0
  %v867 = vmax.f32 %v811, 0.0
  %v868 = vmax.f32 %v814, 0.0
  %v869 = vmax.f32 %v817, 0.0
  %v870 = vmax.f32 %v820, 0.0
  %s871 = scalar_lea.vmem %s0, 1176
  %v872 = vld [vmem:[%s871] sm:$0xff]
  %v873 = vld [vmem:[%s871 + $0x8] sm:$0xff]
  %v874 = vld [vmem:[%s871 + $0x10] sm:$0xff]
  %v875 = vld [vmem:[%s871 + $0x18] sm:$0xff]
  %v876 = vld [vmem:[%s871 + $0x20] sm:$0xff]
  %v877 = vld [vmem:[%s871 + $0x28] sm:$0xff]
  %v878 = vld [vmem:[%s871 + $0x30] sm:$0xff]
  %v879 = vld [vmem:[%s871 + $0x38] sm:$0xff]
  %v880 = vld [vmem:[%s871 + $0x40] sm:$0xff]
  %v881 = vld [vmem:[%s871 + $0x48] sm:$0xff]
  %v882 = vld [vmem:[%s871 + $0x50] sm:$0xff]
  %v883 = vld [vmem:[%s871 + $0x58] sm:$0xff]
  %v884 = vld [vmem:[%s871 + $0x60] sm:$0xff]
  %v885 = vld [vmem:[%s871 + $0x68] sm:$0xff]
  %v886 = vld [vmem:[%s871 + $0x70] sm:$0xff]
  %v887 = vld [vmem:[%s871 + $0x78] sm:$0xff]
  %v888 = vld [vmem:[%s871 + $0x80] sm:$0xff]
  %v889 = vld [vmem:[%s871 + $0x88] sm:$0xff]
  %v890 = vld [vmem:[%s871 + $0x90] sm:$0xff]
  %v891 = vld [vmem:[%s871 + $0x98] sm:$0xff]
  %v892 = vld [vmem:[%s871 + $0xa0] sm:$0xff]
  %v893 = vld [vmem:[%s871 + $0xa8] sm:$0xff]
  %v894 = vld [vmem:[%s871 + $0xb0] sm:$0xff]
  %v895 = vld [vmem:[%s871 + $0xb8] sm:$0xff]
  %v896 = vld [vmem:[%s871 + $0xc0] sm:$0xff]
  %v897 = vld [vmem:[%s871 + $0xc8] sm:$0xff]
  %v898 = vld [vmem:[%s871 + $0xd0] sm:$0xff]
  %v899 = vld [vmem:[%s871 + $0xd8] sm:$0xff]
  %v900 = vld [vmem:[%s871 + $0xe0] sm:$0xff]
  %v901 = vld [vmem:[%s871 + $0xe8] sm:$0xff]
  %v902 = vld [vmem:[%s871 + $0xf0] sm:$0xff]
  %v903 = vld [vmem:[%s871 + $0xf8] sm:$0xff]
  %v904 = vld [vmem:[%s871 + $0x100] sm:$0xff]
  %v905 = vld [vmem:[%s871 + $0x108] sm:$0xff]
  %v906 = vld [vmem:[%s871 + $0x110] sm:$0xff]
  %v907 = vld [vmem:[%s871 + $0x118] sm:$0xff]
  %v908 = vld [vmem:[%s871 + $0x120] sm:$0xff]
  %v909 = vld [vmem:[%s871 + $0x128] sm:$0xff]
  %v910 = vld [vmem:[%s871 + $0x130] sm:$0xff]
  %v911 = vld [vmem:[%s871 + $0x138] sm:$0xff]
  %v912 = vld [vmem:[%s871 + $0x140] sm:$0xff]
  %v913 = vld [vmem:[%s871 + $0x148] sm:$0xff]
  %v914 = vld [vmem:[%s871 + $0x150] sm:$0xff]
  %v915 = vld [vmem:[%s871 + $0x158] sm:$0xff]
  %v916 = vld [vmem:[%s871 + $0x160] sm:$0xff]
  %v917 = vld [vmem:[%s871 + $0x168] sm:$0xff]
  %v918 = vld [vmem:[%s871 + $0x170] sm:$0xff]
  %v919 = vld [vmem:[%s871 + $0x178] sm:$0xff]
  %v920 = vld [vmem:[%s871 + $0x180] sm:$0xff]
  %921 = vmatpush.msra.mxu0 %v29
  %922 = vmatpush.msra.mxu0 %v28
  %923 = vmatpush.msra.mxu0 %v27
  %924 = vmatpush.msra.mxu0 %v26
  %925 = vmatpush.msra.mxu0 %v25
  %926 = vmatpush.msra.mxu0 %v24
  %927 = vmatpush.msra.mxu0 %v23
  %928 = vmatpush.msra.mxu0 %v22
  %929 = vmatpush.msra.mxu0 %v21
  %930 = vmatpush.msra.mxu0 %v20
  %931 = vmatpush.msra.mxu0 %v19
  %932 = vmatpush.msra.mxu0 %v18
  %933 = vmatpush.msra.mxu0 %v17
  %934 = vmatpush.msra.mxu0 %v16
  %935 = vmatpush.msra.mxu0 %v15
  %936 = vmatpush.msra.mxu0 %v14
  %937 = vmatmul.f32.gmra.mxu0 %v872
  %v938 = vpop.f32.mrf.mxu0
  %v939 = vadd.f32 %v81, %v938
  %940 = vmatmul.f32.gmra.mxu0 %v873
  %v941 = vpop.f32.mrf.mxu0
  %v942 = vadd.f32 %v81, %v941
  %943 = vmatmul.f32.gmra.mxu0 %v874
  %v944 = vpop.f32.mrf.mxu0
  %v945 = vadd.f32 %v81, %v944
  %946 = vmatmul.f32.gmra.mxu0 %v875
  %v947 = vpop.f32.mrf.mxu0
  %v948 = vadd.f32 %v81, %v947
  %949 = vmatmul.f32.gmra.mxu0 %v876
  %v950 = vpop.f32.mrf.mxu0
  %v951 = vadd.f32 %v81, %v950
  %952 = vmatmul.f32.gmra.mxu0 %v877
  %v953 = vpop.f32.mrf.mxu0
  %v954 = vadd.f32 %v81, %v953
  %955 = vmatmul.f32.gmra.mxu0 %v878
  %v956 = vpop.f32.mrf.mxu0
  %v957 = vadd.f32 %v81, %v956
  %958 = vmatmul.f32.gmra.mxu0 %v879
  %v959 = vpop.f32.mrf.mxu0
  %v960 = vadd.f32 %v81, %v959
  %961 = vmatmul.f32.gmra.mxu0 %v880
  %v962 = vpop.f32.mrf.mxu0
  %v963 = vadd.f32 %v81, %v962
  %964 = vmatmul.f32.gmra.mxu0 %v881
  %v965 = vpop.f32.mrf.mxu0
  %v966 = vadd.f32 %v81, %v965
  %967 = vmatmul.f32.gmra.mxu0 %v882
  %v968 = vpop.f32.mrf.mxu0
  %v969 = vadd.f32 %v81, %v968
  %970 = vmatmul.f32.gmra.mxu0 %v883
  %v971 = vpop.f32.mrf.mxu0
  %v972 = vadd.f32 %v81, %v971
  %973 = vmatmul.f32.gmra.mxu0 %v884
  %v974 = vpop.f32.mrf.mxu0
  %v975 = vadd.f32 %v81, %v974
  %976 = vmatmul.f32.gmra.mxu0 %v885
  %v977 = vpop.f32.mrf.mxu0
  %v978 = vadd.f32 %v81, %v977
  %979 = vmatmul.f32.gmra.mxu0 %v886
  %v980 = vpop.f32.mrf.mxu0
  %v981 = vadd.f32 %v81, %v980
  %982 = vmatmul.f32.gmra.mxu0 %v887
  %v983 = vpop.f32.mrf.mxu0
  %v984 = vadd.f32 %v81, %v983
  %985 = vmatmul.f32.gmra.mxu0 %v888
  %v986 = vpop.f32.mrf.mxu0
  %v987 = vadd.f32 %v81, %v986
  %988 = vmatmul.f32.gmra.mxu0 %v889
  %v989 = vpop.f32.mrf.mxu0
  %v990 = vadd.f32 %v81, %v989
  %991 = vmatmul.f32.gmra.mxu0 %v890
  %v992 = vpop.f32.mrf.mxu0
  %v993 = vadd.f32 %v81, %v992
  %994 = vmatmul.f32.gmra.mxu0 %v891
  %v995 = vpop.f32.mrf.mxu0
  %v996 = vadd.f32 %v81, %v995
  %997 = vmatmul.f32.gmra.mxu0 %v892
  %v998 = vpop.f32.mrf.mxu0
  %v999 = vadd.f32 %v81, %v998
  %1000 = vmatmul.f32.gmra.mxu0 %v893
  %v1001 = vpop.f32.mrf.mxu0
  %v1002 = vadd.f32 %v81, %v1001
  %1003 = vmatmul.f32.gmra.mxu0 %v894
  %v1004 = vpop.f32.mrf.mxu0
  %v1005 = vadd.f32 %v81, %v1004
  %1006 = vmatmul.f32.gmra.mxu0 %v895
  %v1007 = vpop.f32.mrf.mxu0
  %v1008 = vadd.f32 %v81, %v1007
  %1009 = vmatmul.f32.gmra.mxu0 %v896
  %v1010 = vpop.f32.mrf.mxu0
  %v1011 = vadd.f32 %v81, %v1010
  %1012 = vmatmul.f32.gmra.mxu0 %v897
  %v1013 = vpop.f32.mrf.mxu0
  %v1014 = vadd.f32 %v81, %v1013
  %1015 = vmatmul.f32.gmra.mxu0 %v898
  %v1016 = vpop.f32.mrf.mxu0
  %v1017 = vadd.f32 %v81, %v1016
  %1018 = vmatmul.f32.gmra.mxu0 %v899
  %v1019 = vpop.f32.mrf.mxu0
  %v1020 = vadd.f32 %v81, %v1019
  %1021 = vmatmul.f32.gmra.mxu0 %v900
  %v1022 = vpop.f32.mrf.mxu0
  %v1023 = vadd.f32 %v81, %v1022
  %1024 = vmatmul.f32.gmra.mxu0 %v901
  %v1025 = vpop.f32.mrf.mxu0
  %v1026 = vadd.f32 %v81, %v1025
  %1027 = vmatmul.f32.gmra.mxu0 %v902
  %v1028 = vpop.f32.mrf.mxu0
  %v1029 = vadd.f32 %v81, %v1028
  %1030 = vmatmul.f32.gmra.mxu0 %v903
  %v1031 = vpop.f32.mrf.mxu0
  %v1032 = vadd.f32 %v81, %v1031
  %1033 = vmatmul.f32.gmra.mxu0 %v904
  %v1034 = vpop.f32.mrf.mxu0
  %v1035 = vadd.f32 %v81, %v1034
  %1036 = vmatmul.f32.gmra.mxu0 %v905
  %v1037 = vpop.f32.mrf.mxu0
  %v1038 = vadd.f32 %v81, %v1037
  %1039 = vmatmul.f32.gmra.mxu0 %v906
  %v1040 = vpop.f32.mrf.mxu0
  %v1041 = vadd.f32 %v81, %v1040
  %1042 = vmatmul.f32.gmra.mxu0 %v907
  %v1043 = vpop.f32.mrf.mxu0
  %v1044 = vadd.f32 %v81, %v1043
  %1045 = vmatmul.f32.gmra.mxu0 %v908
  %v1046 = vpop.f32.mrf.mxu0
  %v1047 = vadd.f32 %v81, %v1046
  %1048 = vmatmul.f32.gmra.mxu0 %v909
  %v1049 = vpop.f32.mrf.mxu0
  %v1050 = vadd.f32 %v81, %v1049
  %1051 = vmatmul.f32.gmra.mxu0 %v910
  %v1052 = vpop.f32.mrf.mxu0
  %v1053 = vadd.f32 %v81, %v1052
  %1054 = vmatmul.f32.gmra.mxu0 %v911
  %v1055 = vpop.f32.mrf.mxu0
  %v1056 = vadd.f32 %v81, %v1055
  %1057 = vmatmul.f32.gmra.mxu0 %v912
  %v1058 = vpop.f32.mrf.mxu0
  %v1059 = vadd.f32 %v81, %v1058
  %1060 = vmatmul.f32.gmra.mxu0 %v913
  %v1061 = vpop.f32.mrf.mxu0
  %v1062 = vadd.f32 %v81, %v1061
  %1063 = vmatmul.f32.gmra.mxu0 %v914
  %v1064 = vpop.f32.mrf.mxu0
  %v1065 = vadd.f32 %v81, %v1064
  %1066 = vmatmul.f32.gmra.mxu0 %v915
  %v1067 = vpop.f32.mrf.mxu0
  %v1068 = vadd.f32 %v81, %v1067
  %1069 = vmatmul.f32.gmra.mxu0 %v916
  %v1070 = vpop.f32.mrf.mxu0
  %v1071 = vadd.f32 %v81, %v1070
  %1072 = vmatmul.f32.gmra.mxu0 %v917
  %v1073 = vpop.f32.mrf.mxu0
  %v1074 = vadd.f32 %v81, %v1073
  %1075 = vmatmul.f32.gmra.mxu0 %v918
  %v1076 = vpop.f32.mrf.mxu0
  %v1077 = vadd.f32 %v81, %v1076
  %1078 = vmatmul.f32.gmra.mxu0 %v919
  %v1079 = vpop.f32.mrf.mxu0
  %v1080 = vadd.f32 %v81, %v1079
  %1081 = vmatmul.f32.gmra.mxu0 %v920
  %v1082 = vpop.f32.mrf.mxu0
  %v1083 = vadd.f32 %v81, %v1082
  %1084 = vdwg.mxu0
  %v1085 = vmax.f32 %v939, 0.0
  %v1086 = vmax.f32 %v942, 0.0
  %v1087 = vmax.f32 %v945, 0.0
  %v1088 = vmax.f32 %v948, 0.0
  %v1089 = vmax.f32 %v951, 0.0
  %v1090 = vmax.f32 %v954, 0.0
  %v1091 = vmax.f32 %v957, 0.0
  %v1092 = vmax.f32 %v960, 0.0
  %v1093 = vmax.f32 %v963, 0.0
  %v1094 = vmax.f32 %v966, 0.0
  %v1095 = vmax.f32 %v969, 0.0
  %v1096 = vmax.f32 %v972, 0.0
  %v1097 = vmax.f32 %v975, 0.0
  %v1098 = vmax.f32 %v978, 0.0
  %v1099 = vmax.f32 %v981, 0.0
  %v1100 = vmax.f32 %v984, 0.0
  %v1101 = vmax.f32 %v987, 0.0
  %v1102 = vmax.f32 %v990, 0.0
  %v1103 = vmax.f32 %v993, 0.0
  %v1104 = vmax.f32 %v996, 0.0
  %v1105 = vmax.f32 %v999, 0.0
  %v1106 = vmax.f32 %v1002, 0.0
  %v1107 = vmax.f32 %v1005, 0.0
  %v1108 = vmax.f32 %v1008, 0.0
  %v1109 = vmax.f32 %v1011, 0.0
  %v1110 = vmax.f32 %v1014, 0.0
  %v1111 = vmax.f32 %v1017, 0.0
  %v1112 = vmax.f32 %v1020, 0.0
  %v1113 = vmax.f32 %v1023, 0.0
  %v1114 = vmax.f32 %v1026, 0.0
  %v1115 = vmax.f32 %v1029, 0.0
  %v1116 = vmax.f32 %v1032, 0.0
  %v1117 = vmax.f32 %v1035, 0.0
  %v1118 = vmax.f32 %v1038, 0.0
  %v1119 = vmax.f32 %v1041, 0.0
  %v1120 = vmax.f32 %v1044, 0.0
  %v1121 = vmax.f32 %v1047, 0.0
  %v1122 = vmax.f32 %v1050, 0.0
  %v1123 = vmax.f32 %v1053, 0.0
  %v1124 = vmax.f32 %v1056, 0.0
  %v1125 = vmax.f32 %v1059, 0.0
  %v1126 = vmax.f32 %v1062, 0.0
  %v1127 = vmax.f32 %v1065, 0.0
  %v1128 = vmax.f32 %v1068, 0.0
  %v1129 = vmax.f32 %v1071, 0.0
  %v1130 = vmax.f32 %v1074, 0.0
  %v1131 = vmax.f32 %v1077, 0.0
  %v1132 = vmax.f32 %v1080, 0.0
  %v1133 = vmax.f32 %v1083, 0.0
  %v1134 = vmax.f32 %v822, %v1085
  %v1135 = vmax.f32 %v823, %v1086
  %v1136 = vmax.f32 %v824, %v1087
  %v1137 = vmax.f32 %v825, %v1088
  %v1138 = vmax.f32 %v826, %v1089
  %v1139 = vmax.f32 %v827, %v1090
  %v1140 = vmax.f32 %v828, %v1091
  %v1141 = vmax.f32 %v829, %v1092
  %v1142 = vmax.f32 %v830, %v1093
  %v1143 = vmax.f32 %v831, %v1094
  %v1144 = vmax.f32 %v832, %v1095
  %v1145 = vmax.f32 %v833, %v1096
  %v1146 = vmax.f32 %v834, %v1097
  %v1147 = vmax.f32 %v835, %v1098
  %v1148 = vmax.f32 %v836, %v1099
  %v1149 = vmax.f32 %v837, %v1100
  %v1150 = vmax.f32 %v838, %v1101
  %v1151 = vmax.f32 %v839, %v1102
  %v1152 = vmax.f32 %v840, %v1103
  %v1153 = vmax.f32 %v841, %v1104
  %v1154 = vmax.f32 %v842, %v1105
  %v1155 = vmax.f32 %v843, %v1106
  %v1156 = vmax.f32 %v844, %v1107
  %v1157 = vmax.f32 %v845, %v1108
  %v1158 = vmax.f32 %v846, %v1109
  %v1159 = vmax.f32 %v847, %v1110
  %v1160 = vmax.f32 %v848, %v1111
  %v1161 = vmax.f32 %v849, %v1112
  %v1162 = vmax.f32 %v850, %v1113
  %v1163 = vmax.f32 %v851, %v1114
  %v1164 = vmax.f32 %v852, %v1115
  %v1165 = vmax.f32 %v853, %v1116
  %v1166 = vmax.f32 %v854, %v1117
  %v1167 = vmax.f32 %v855, %v1118
  %v1168 = vmax.f32 %v856, %v1119
  %v1169 = vmax.f32 %v857, %v1120
  %v1170 = vmax.f32 %v858, %v1121
  %v1171 = vmax.f32 %v859, %v1122
  %v1172 = vmax.f32 %v860, %v1123
  %v1173 = vmax.f32 %v861, %v1124
  %v1174 = vmax.f32 %v862, %v1125
  %v1175 = vmax.f32 %v863, %v1126
  %v1176 = vmax.f32 %v864, %v1127
  %v1177 = vmax.f32 %v865, %v1128
  %v1178 = vmax.f32 %v866, %v1129
  %v1179 = vmax.f32 %v867, %v1130
  %v1180 = vmax.f32 %v868, %v1131
  %v1181 = vmax.f32 %v869, %v1132
  %v1182 = vmax.f32 %v870, %v1133
  %v1183 = vmax.f32 %v559, %v1134
  %v1184 = vmax.f32 %v560, %v1135
  %v1185 = vmax.f32 %v561, %v1136
  %v1186 = vmax.f32 %v562, %v1137
  %v1187 = vmax.f32 %v563, %v1138
  %v1188 = vmax.f32 %v564, %v1139
  %v1189 = vmax.f32 %v565, %v1140
  %v1190 = vmax.f32 %v566, %v1141
  %v1191 = vmax.f32 %v567, %v1142
  %v1192 = vmax.f32 %v568, %v1143
  %v1193 = vmax.f32 %v569, %v1144
  %v1194 = vmax.f32 %v570, %v1145
  %v1195 = vmax.f32 %v571, %v1146
  %v1196 = vmax.f32 %v572, %v1147
  %v1197 = vmax.f32 %v573, %v1148
  %v1198 = vmax.f32 %v574, %v1149
  %v1199 = vmax.f32 %v575, %v1150
  %v1200 = vmax.f32 %v576, %v1151
  %v1201 = vmax.f32 %v577, %v1152
  %v1202 = vmax.f32 %v578, %v1153
  %v1203 = vmax.f32 %v579, %v1154
  %v1204 = vmax.f32 %v580, %v1155
  %v1205 = vmax.f32 %v581, %v1156
  %v1206 = vmax.f32 %v582, %v1157
  %v1207 = vmax.f32 %v583, %v1158
  %v1208 = vmax.f32 %v584, %v1159
  %v1209 = vmax.f32 %v585, %v1160
  %v1210 = vmax.f32 %v586, %v1161
  %v1211 = vmax.f32 %v587, %v1162
  %v1212 = vmax.f32 %v588, %v1163
  %v1213 = vmax.f32 %v589, %v1164
  %v1214 = vmax.f32 %v590, %v1165
  %v1215 = vmax.f32 %v591, %v1166
  %v1216 = vmax.f32 %v592, %v1167
  %v1217 = vmax.f32 %v593, %v1168
  %v1218 = vmax.f32 %v594, %v1169
  %v1219 = vmax.f32 %v595, %v1170
  %v1220 = vmax.f32 %v596, %v1171
  %v1221 = vmax.f32 %v597, %v1172
  %v1222 = vmax.f32 %v598, %v1173
  %v1223 = vmax.f32 %v599, %v1174
  %v1224 = vmax.f32 %v600, %v1175
  %v1225 = vmax.f32 %v601, %v1176
  %v1226 = vmax.f32 %v602, %v1177
  %v1227 = vmax.f32 %v603, %v1178
  %v1228 = vmax.f32 %v604, %v1179
  %v1229 = vmax.f32 %v605, %v1180
  %v1230 = vmax.f32 %v606, %v1181
  %v1231 = vmax.f32 %v607, %v1182
  %1232 = vst [vmem:[%s3] sm:$0xff] %v1183
  %1233 = vst [vmem:[%s3 + $0x8] sm:$0xff] %v1184
  %1234 = vst [vmem:[%s3 + $0x10] sm:$0xff] %v1185
  %1235 = vst [vmem:[%s3 + $0x18] sm:$0xff] %v1186
  %1236 = vst [vmem:[%s3 + $0x20] sm:$0xff] %v1187
  %1237 = vst [vmem:[%s3 + $0x28] sm:$0xff] %v1188
  %1238 = vst [vmem:[%s3 + $0x30] sm:$0xff] %v1189
  %1239 = vst [vmem:[%s3 + $0x38] sm:$0xff] %v1190
  %1240 = vst [vmem:[%s3 + $0x40] sm:$0xff] %v1191
  %1241 = vst [vmem:[%s3 + $0x48] sm:$0xff] %v1192
  %1242 = vst [vmem:[%s3 + $0x50] sm:$0xff] %v1193
  %1243 = vst [vmem:[%s3 + $0x58] sm:$0xff] %v1194
  %1244 = vst [vmem:[%s3 + $0x60] sm:$0xff] %v1195
  %1245 = vst [vmem:[%s3 + $0x68] sm:$0xff] %v1196
  %1246 = vst [vmem:[%s3 + $0x70] sm:$0xff] %v1197
  %1247 = vst [vmem:[%s3 + $0x78] sm:$0xff] %v1198
  %1248 = vst [vmem:[%s3 + $0x80] sm:$0xff] %v1199
  %1249 = vst [vmem:[%s3 + $0x88] sm:$0xff] %v1200
  %1250 = vst [vmem:[%s3 + $0x90] sm:$0xff] %v1201
  %1251 = vst [vmem:[%s3 + $0x98] sm:$0xff] %v1202
  %1252 = vst [vmem:[%s3 + $0xa0] sm:$0xff] %v1203
  %1253 = vst [vmem:[%s3 + $0xa8] sm:$0xff] %v1204
  %1254 = vst [vmem:[%s3 + $0xb0] sm:$0xff] %v1205
  %1255 = vst [vmem:[%s3 + $0xb8] sm:$0xff] %v1206
  %1256 = vst [vmem:[%s3 + $0xc0] sm:$0xff] %v1207
  %1257 = vst [vmem:[%s3 + $0xc8] sm:$0xff] %v1208
  %1258 = vst [vmem:[%s3 + $0xd0] sm:$0xff] %v1209
  %1259 = vst [vmem:[%s3 + $0xd8] sm:$0xff] %v1210
  %1260 = vst [vmem:[%s3 + $0xe0] sm:$0xff] %v1211
  %1261 = vst [vmem:[%s3 + $0xe8] sm:$0xff] %v1212
  %1262 = vst [vmem:[%s3 + $0xf0] sm:$0xff] %v1213
  %1263 = vst [vmem:[%s3 + $0xf8] sm:$0xff] %v1214
  %1264 = vst [vmem:[%s3 + $0x100] sm:$0xff] %v1215
  %1265 = vst [vmem:[%s3 + $0x108] sm:$0xff] %v1216
  %1266 = vst [vmem:[%s3 + $0x110] sm:$0xff] %v1217
  %1267 = vst [vmem:[%s3 + $0x118] sm:$0xff] %v1218
  %1268 = vst [vmem:[%s3 + $0x120] sm:$0xff] %v1219
  %1269 = vst [vmem:[%s3 + $0x128] sm:$0xff] %v1220
  %1270 = vst [vmem:[%s3 + $0x130] sm:$0xff] %v1221
  %1271 = vst [vmem:[%s3 + $0x138] sm:$0xff] %v1222
  %1272 = vst [vmem:[%s3 + $0x140] sm:$0xff] %v1223
  %1273 = vst [vmem:[%s3 + $0x148] sm:$0xff] %v1224
  %1274 = vst [vmem:[%s3 + $0x150] sm:$0xff] %v1225
  %1275 = vst [vmem:[%s3 + $0x158] sm:$0xff] %v1226
  %1276 = vst [vmem:[%s3 + $0x160] sm:$0xff] %v1227
  %1277 = vst [vmem:[%s3 + $0x168] sm:$0xff] %v1228
  %1278 = vst [vmem:[%s3 + $0x170] sm:$0xff] %v1229
  %1279 = vst [vmem:[%s3 + $0x178] sm:$0xff] %v1230
  %1280 = vst [vmem:[%s3 + $0x180] sm:$0xff] %v1231
  // Predicated region
  $region14: #{net_forward.3} parent=0 // pred_check
    _
  $region15: #{net_forward.3} parent=0 // pred_check_branch
    %1282 = sbr.rel (0) target = $region17
  $region16: #{net_forward.3} parent=0 // pred_region
    _
  $region17: #{net_forward.3} parent=0 // pred_fallthru
    _
  // Predicated region
  $region18: #{net_forward.3} parent=0 // pred_check
    _
  $region19: #{net_forward.3} parent=0 // pred_check_branch
    %1284 = sbr.rel (0) target = $region21
  $region20: #{net_forward.3} parent=0 // pred_region
    _
  $region21: #{net_forward.3} parent=0 // pred_fallthru
    _

// kernel: net_forward.4
$region0: #{net_forward.4}
  #allocation0 [shape = 'u32[]', space=smem, size = 0x4, offset = 0x4, fixed_abs, tag = 'smem constant byte address 0x4 - core index']
  #allocation1 [shape = 'u32[72,128]{1,0:T(1,128)}', space=vmem, size = 0x9000, scoped, tag = 'internal scratch']
  %s0 = inlined_call_operand.vmem [shape: f32[4,56,256], index: 0, kind: input, shape index: {}]
  %s1 = inlined_call_operand.vmem [shape: f32[256,128], index: 1, kind: input, shape index: {}]
  %s2 = inlined_call_operand.vmem [shape: f32[1,128], index: 2, kind: input, shape index: {}]
  %s3 = inlined_call_operand.vmem [shape: f32[56,128], index: 3, kind: output, shape index: {}]
  %s4 = sld [smem:[#allocation0]]
  $region22: #{net_forward.4} parent=0
    _
  %s6 = ssub.s32 1, %s4
  %s7 = scalar_select 0, %s6, %s4
  // Predicated region
  $region2: #{net_forward.4} parent=0 // pred_check
    _
  $region3: #{net_forward.4} parent=0 // pred_check_branch
    %9 = sbr.rel (0) target = $region5
  $region4: #{net_forward.4} parent=0 // pred_region
    _
  $region5: #{net_forward.4} parent=0 // pred_fallthru
    _
  // Predicated region
  $region6: #{net_forward.4} parent=0 // pred_check
    _
  $region7: #{net_forward.4} parent=0 // pred_check_branch
    %11 = sbr.rel (0) target = $region9
  $region8: #{net_forward.4} parent=0 // pred_region
    _
  $region9: #{net_forward.4} parent=0 // pred_fallthru
    _
  // Predicated region
  $region10: #{net_forward.4} parent=0 // pred_check
    _
  $region11: #{net_forward.4} parent=0 // pred_check_branch
    %13 = sbr.rel (0) target = $region13
  $region12: #{net_forward.4} parent=0 // pred_region
    _
  $region13: #{net_forward.4} parent=0 // pred_fallthru
    _
  %v14 = vld [vmem:[%s1] sm:$0xff]
  %v15 = vld [vmem:[%s1 + $0x8] sm:$0xff]
  %v16 = vld [vmem:[%s1 + $0x10] sm:$0xff]
  %v17 = vld [vmem:[%s1 + $0x18] sm:$0xff]
  %v18 = vld [vmem:[%s1 + $0x20] sm:$0xff]
  %v19 = vld [vmem:[%s1 + $0x28] sm:$0xff]
  %v20 = vld [vmem:[%s1 + $0x30] sm:$0xff]
  %v21 = vld [vmem:[%s1 + $0x38] sm:$0xff]
  %v22 = vld [vmem:[%s1 + $0x40] sm:$0xff]
  %v23 = vld [vmem:[%s1 + $0x48] sm:$0xff]
  %v24 = vld [vmem:[%s1 + $0x50] sm:$0xff]
  %v25 = vld [vmem:[%s1 + $0x58] sm:$0xff]
  %v26 = vld [vmem:[%s1 + $0x60] sm:$0xff]
  %v27 = vld [vmem:[%s1 + $0x68] sm:$0xff]
  %v28 = vld [vmem:[%s1 + $0x70] sm:$0xff]
  %v29 = vld [vmem:[%s1 + $0x78] sm:$0xff]
  %v30 = vld [vmem:[%s1 + $0x80] sm:$0xff]
  %v31 = vld [vmem:[%s1 + $0x88] sm:$0xff]
  %v32 = vld [vmem:[%s1 + $0x90] sm:$0xff]
  %v33 = vld [vmem:[%s1 + $0x98] sm:$0xff]
  %v34 = vld [vmem:[%s1 + $0xa0] sm:$0xff]
  %v35 = vld [vmem:[%s1 + $0xa8] sm:$0xff]
  %v36 = vld [vmem:[%s1 + $0xb0] sm:$0xff]
  %v37 = vld [vmem:[%s1 + $0xb8] sm:$0xff]
  %v38 = vld [vmem:[%s1 + $0xc0] sm:$0xff]
  %v39 = vld [vmem:[%s1 + $0xc8] sm:$0xff]
  %v40 = vld [vmem:[%s1 + $0xd0] sm:$0xff]
  %v41 = vld [vmem:[%s1 + $0xd8] sm:$0xff]
  %v42 = vld [vmem:[%s1 + $0xe0] sm:$0xff]
  %v43 = vld [vmem:[%s1 + $0xe8] sm:$0xff]
  %v44 = vld [vmem:[%s1 + $0xf0] sm:$0xff]
  %v45 = vld [vmem:[%s1 + $0xf8] sm:$0xff]
  %v46 = vld [vmem:[%s2] sm:$0x1]
  %v47 = vld [vmem:[%s0] sm:$0xff]
  %v48 = vld [vmem:[%s0 + $0x8] sm:$0xff]
  %v49 = vld [vmem:[%s0 + $0x10] sm:$0xff]
  %v50 = vld [vmem:[%s0 + $0x18] sm:$0xff]
  %v51 = vld [vmem:[%s0 + $0x20] sm:$0xff]
  %v52 = vld [vmem:[%s0 + $0x28] sm:$0xff]
  %v53 = vld [vmem:[%s0 + $0x30] sm:$0xff]
  %v54 = vld [vmem:[%s0 + $0x38] sm:$0xff]
  %v55 = vld [vmem:[%s0 + $0x40] sm:$0xff]
  %v56 = vld [vmem:[%s0 + $0x48] sm:$0xff]
  %v57 = vld [vmem:[%s0 + $0x50] sm:$0xff]
  %v58 = vld [vmem:[%s0 + $0x58] sm:$0xff]
  %v59 = vld [vmem:[%s0 + $0x60] sm:$0xff]
  %v60 = vld [vmem:[%s0 + $0x68] sm:$0xff]
  %v62 = vperm.slane %v46, 0
  %64 = vmatpush.msra.mxu0 %v29
  %65 = vmatpush.msra.mxu0 %v28
  %66 = vmatpush.msra.mxu0 %v27
  %67 = vmatpush.msra.mxu0 %v26
  %68 = vmatpush.msra.mxu0 %v25
  %69 = vmatpush.msra.mxu0 %v24
  %70 = vmatpush.msra.mxu0 %v23
  %71 = vmatpush.msra.mxu0 %v22
  %72 = vmatpush.msra.mxu0 %v21
  %73 = vmatpush.msra.mxu0 %v20
  %74 = vmatpush.msra.mxu0 %v19
  %75 = vmatpush.msra.mxu0 %v18
  %76 = vmatpush.msra.mxu0 %v17
  %77 = vmatpush.msra.mxu0 %v16
  %78 = vmatpush.msra.mxu0 %v15
  %79 = vmatpush.msra.mxu0 %v14
  %80 = vmatmul.f32.gmra.mxu0 %v47
  %v81 = vpop.f32.mrf.mxu0
  %v82 = vadd.f32 %v62, %v81
  %83 = vmatmul.f32.gmra.mxu0 %v49
  %v84 = vpop.f32.mrf.mxu0
  %v85 = vadd.f32 %v62, %v84
  %86 = vmatmul.f32.gmra.mxu0 %v51
  %v87 = vpop.f32.mrf.mxu0
  %v88 = vadd.f32 %v62, %v87
  %89 = vmatmul.f32.gmra.mxu0 %v53
  %v90 = vpop.f32.mrf.mxu0
  %v91 = vadd.f32 %v62, %v90
  %92 = vmatmul.f32.gmra.mxu0 %v55
  %v93 = vpop.f32.mrf.mxu0
  %v94 = vadd.f32 %v62, %v93
  %95 = vmatmul.f32.gmra.mxu0 %v57
  %v96 = vpop.f32.mrf.mxu0
  %v97 = vadd.f32 %v62, %v96
  %98 = vmatmul.f32.gmra.mxu0 %v59
  %v99 = vpop.f32.mrf.mxu0
  %v100 = vadd.f32 %v62, %v99
  %101 = vdwg.mxu0
  %102 = vmatpush.msra.mxu0 %v45
  %103 = vmatpush.msra.mxu0 %v44
  %104 = vmatpush.msra.mxu0 %v43
  %105 = vmatpush.msra.mxu0 %v42
  %106 = vmatpush.msra.mxu0 %v41
  %107 = vmatpush.msra.mxu0 %v40
  %108 = vmatpush.msra.mxu0 %v39
  %109 = vmatpush.msra.mxu0 %v38
  %110 = vmatpush.msra.mxu0 %v37
  %111 = vmatpush.msra.mxu0 %v36
  %112 = vmatpush.msra.mxu0 %v35
  %113 = vmatpush.msra.mxu0 %v34
  %114 = vmatpush.msra.mxu0 %v33
  %115 = vmatpush.msra.mxu0 %v32
  %116 = vmatpush.msra.mxu0 %v31
  %117 = vmatpush.msra.mxu0 %v30
  %118 = vmatmul.f32.gmra.mxu0 %v48
  %v119 = vpop.f32.mrf.mxu0
  %v120 = vadd.f32 %v82, %v119
  %121 = vmatmul.f32.gmra.mxu0 %v50
  %v122 = vpop.f32.mrf.mxu0
  %v123 = vadd.f32 %v85, %v122
  %124 = vmatmul.f32.gmra.mxu0 %v52
  %v125 = vpop.f32.mrf.mxu0
  %v126 = vadd.f32 %v88, %v125
  %127 = vmatmul.f32.gmra.mxu0 %v54
  %v128 = vpop.f32.mrf.mxu0
  %v129 = vadd.f32 %v91, %v128
  %130 = vmatmul.f32.gmra.mxu0 %v56
  %v131 = vpop.f32.mrf.mxu0
  %v132 = vadd.f32 %v94, %v131
  %133 = vmatmul.f32.gmra.mxu0 %v58
  %v134 = vpop.f32.mrf.mxu0
  %v135 = vadd.f32 %v97, %v134
  %136 = vmatmul.f32.gmra.mxu0 %v60
  %v137 = vpop.f32.mrf.mxu0
  %v138 = vadd.f32 %v100, %v137
  %139 = vdwg.mxu0
  %v140 = vmax.f32 %v120, 0.0
  %v141 = vmax.f32 %v123, 0.0
  %v142 = vmax.f32 %v126, 0.0
  %v143 = vmax.f32 %v129, 0.0
  %v144 = vmax.f32 %v132, 0.0
  %v145 = vmax.f32 %v135, 0.0
  %v146 = vmax.f32 %v138, 0.0
  %s147 = scalar_lea.vmem %s0, 112
  %v148 = vld [vmem:[%s147] sm:$0xff]
  %v149 = vld [vmem:[%s147 + $0x8] sm:$0xff]
  %v150 = vld [vmem:[%s147 + $0x10] sm:$0xff]
  %v151 = vld [vmem:[%s147 + $0x18] sm:$0xff]
  %v152 = vld [vmem:[%s147 + $0x20] sm:$0xff]
  %v153 = vld [vmem:[%s147 + $0x28] sm:$0xff]
  %v154 = vld [vmem:[%s147 + $0x30] sm:$0xff]
  %v155 = vld [vmem:[%s147 + $0x38] sm:$0xff]
  %v156 = vld [vmem:[%s147 + $0x40] sm:$0xff]
  %v157 = vld [vmem:[%s147 + $0x48] sm:$0xff]
  %v158 = vld [vmem:[%s147 + $0x50] sm:$0xff]
  %v159 = vld [vmem:[%s147 + $0x58] sm:$0xff]
  %v160 = vld [vmem:[%s147 + $0x60] sm:$0xff]
  %v161 = vld [vmem:[%s147 + $0x68] sm:$0xff]
  %162 = vmatpush.msra.mxu0 %v29
  %163 = vmatpush.msra.mxu0 %v28
  %164 = vmatpush.msra.mxu0 %v27
  %165 = vmatpush.msra.mxu0 %v26
  %166 = vmatpush.msra.mxu0 %v25
  %167 = vmatpush.msra.mxu0 %v24
  %168 = vmatpush.msra.mxu0 %v23
  %169 = vmatpush.msra.mxu0 %v22
  %170 = vmatpush.msra.mxu0 %v21
  %171 = vmatpush.msra.mxu0 %v20
  %172 = vmatpush.msra.mxu0 %v19
  %173 = vmatpush.msra.mxu0 %v18
  %174 = vmatpush.msra.mxu0 %v17
  %175 = vmatpush.msra.mxu0 %v16
  %176 = vmatpush.msra.mxu0 %v15
  %177 = vmatpush.msra.mxu0 %v14
  %178 = vmatmul.f32.gmra.mxu0 %v148
  %v179 = vpop.f32.mrf.mxu0
  %v180 = vadd.f32 %v62, %v179
  %181 = vmatmul.f32.gmra.mxu0 %v150
  %v182 = vpop.f32.mrf.mxu0
  %v183 = vadd.f32 %v62, %v182
  %184 = vmatmul.f32.gmra.mxu0 %v152
  %v185 = vpop.f32.mrf.mxu0
  %v186 = vadd.f32 %v62, %v185
  %187 = vmatmul.f32.gmra.mxu0 %v154
  %v188 = vpop.f32.mrf.mxu0
  %v189 = vadd.f32 %v62, %v188
  %190 = vmatmul.f32.gmra.mxu0 %v156
  %v191 = vpop.f32.mrf.mxu0
  %v192 = vadd.f32 %v62, %v191
  %193 = vmatmul.f32.gmra.mxu0 %v158
  %v194 = vpop.f32.mrf.mxu0
  %v195 = vadd.f32 %v62, %v194
  %196 = vmatmul.f32.gmra.mxu0 %v160
  %v197 = vpop.f32.mrf.mxu0
  %v198 = vadd.f32 %v62, %v197
  %199 = vdwg.mxu0
  %200 = vmatpush.msra.mxu0 %v45
  %201 = vmatpush.msra.mxu0 %v44
  %202 = vmatpush.msra.mxu0 %v43
  %203 = vmatpush.msra.mxu0 %v42
  %204 = vmatpush.msra.mxu0 %v41
  %205 = vmatpush.msra.mxu0 %v40
  %206 = vmatpush.msra.mxu0 %v39
  %207 = vmatpush.msra.mxu0 %v38
  %208 = vmatpush.msra.mxu0 %v37
  %209 = vmatpush.msra.mxu0 %v36
  %210 = vmatpush.msra.mxu0 %v35
  %211 = vmatpush.msra.mxu0 %v34
  %212 = vmatpush.msra.mxu0 %v33
  %213 = vmatpush.msra.mxu0 %v32
  %214 = vmatpush.msra.mxu0 %v31
  %215 = vmatpush.msra.mxu0 %v30
  %216 = vmatmul.f32.gmra.mxu0 %v149
  %v217 = vpop.f32.mrf.mxu0
  %v218 = vadd.f32 %v180, %v217
  %219 = vmatmul.f32.gmra.mxu0 %v151
  %v220 = vpop.f32.mrf.mxu0
  %v221 = vadd.f32 %v183, %v220
  %222 = vmatmul.f32.gmra.mxu0 %v153
  %v223 = vpop.f32.mrf.mxu0
  %v224 = vadd.f32 %v186, %v223
  %225 = vmatmul.f32.gmra.mxu0 %v155
  %v226 = vpop.f32.mrf.mxu0
  %v227 = vadd.f32 %v189, %v226
  %228 = vmatmul.f32.gmra.mxu0 %v157
  %v229 = vpop.f32.mrf.mxu0
  %v230 = vadd.f32 %v192, %v229
  %231 = vmatmul.f32.gmra.mxu0 %v159
  %v232 = vpop.f32.mrf.mxu0
  %v233 = vadd.f32 %v195, %v232
  %234 = vmatmul.f32.gmra.mxu0 %v161
  %v235 = vpop.f32.mrf.mxu0
  %v236 = vadd.f32 %v198, %v235
  %237 = vdwg.mxu0
  %v238 = vmax.f32 %v218, 0.0
  %v239 = vmax.f32 %v221, 0.0
  %v240 = vmax.f32 %v224, 0.0
  %v241 = vmax.f32 %v227, 0.0
  %v242 = vmax.f32 %v230, 0.0
  %v243 = vmax.f32 %v233, 0.0
  %v244 = vmax.f32 %v236, 0.0
  %v245 = vmax.f32 %v140, %v238
  %v246 = vmax.f32 %v141, %v239
  %v247 = vmax.f32 %v142, %v240
  %v248 = vmax.f32 %v143, %v241
  %v249 = vmax.f32 %v144, %v242
  %v250 = vmax.f32 %v145, %v243
  %v251 = vmax.f32 %v146, %v244
  %s252 = scalar_lea.vmem %s0, 224
  %v253 = vld [vmem:[%s252] sm:$0xff]
  %v254 = vld [vmem:[%s252 + $0x8] sm:$0xff]
  %v255 = vld [vmem:[%s252 + $0x10] sm:$0xff]
  %v256 = vld [vmem:[%s252 + $0x18] sm:$0xff]
  %v257 = vld [vmem:[%s252 + $0x20] sm:$0xff]
  %v258 = vld [vmem:[%s252 + $0x28] sm:$0xff]
  %v259 = vld [vmem:[%s252 + $0x30] sm:$0xff]
  %v260 = vld [vmem:[%s252 + $0x38] sm:$0xff]
  %v261 = vld [vmem:[%s252 + $0x40] sm:$0xff]
  %v262 = vld [vmem:[%s252 + $0x48] sm:$0xff]
  %v263 = vld [vmem:[%s252 + $0x50] sm:$0xff]
  %v264 = vld [vmem:[%s252 + $0x58] sm:$0xff]
  %v265 = vld [vmem:[%s252 + $0x60] sm:$0xff]
  %v266 = vld [vmem:[%s252 + $0x68] sm:$0xff]
  %267 = vmatpush.msra.mxu0 %v29
  %268 = vmatpush.msra.mxu0 %v28
  %269 = vmatpush.msra.mxu0 %v27
  %270 = vmatpush.msra.mxu0 %v26
  %271 = vmatpush.msra.mxu0 %v25
  %272 = vmatpush.msra.mxu0 %v24
  %273 = vmatpush.msra.mxu0 %v23
  %274 = vmatpush.msra.mxu0 %v22
  %275 = vmatpush.msra.mxu0 %v21
  %276 = vmatpush.msra.mxu0 %v20
  %277 = vmatpush.msra.mxu0 %v19
  %278 = vmatpush.msra.mxu0 %v18
  %279 = vmatpush.msra.mxu0 %v17
  %280 = vmatpush.msra.mxu0 %v16
  %281 = vmatpush.msra.mxu0 %v15
  %282 = vmatpush.msra.mxu0 %v14
  %283 = vmatmul.f32.gmra.mxu0 %v253
  %v284 = vpop.f32.mrf.mxu0
  %v285 = vadd.f32 %v62, %v284
  %286 = vmatmul.f32.gmra.mxu0 %v255
  %v287 = vpop.f32.mrf.mxu0
  %v288 = vadd.f32 %v62, %v287
  %289 = vmatmul.f32.gmra.mxu0 %v257
  %v290 = vpop.f32.mrf.mxu0
  %v291 = vadd.f32 %v62, %v290
  %292 = vmatmul.f32.gmra.mxu0 %v259
  %v293 = vpop.f32.mrf.mxu0
  %v294 = vadd.f32 %v62, %v293
  %295 = vmatmul.f32.gmra.mxu0 %v261
  %v296 = vpop.f32.mrf.mxu0
  %v297 = vadd.f32 %v62, %v296
  %298 = vmatmul.f32.gmra.mxu0 %v263
  %v299 = vpop.f32.mrf.mxu0
  %v300 = vadd.f32 %v62, %v299
  %301 = vmatmul.f32.gmra.mxu0 %v265
  %v302 = vpop.f32.mrf.mxu0
  %v303 = vadd.f32 %v62, %v302
  %304 = vdwg.mxu0
  %305 = vmatpush.msra.mxu0 %v45
  %306 = vmatpush.msra.mxu0 %v44
  %307 = vmatpush.msra.mxu0 %v43
  %308 = vmatpush.msra.mxu0 %v42
  %309 = vmatpush.msra.mxu0 %v41
  %310 = vmatpush.msra.mxu0 %v40
  %311 = vmatpush.msra.mxu0 %v39
  %312 = vmatpush.msra.mxu0 %v38
  %313 = vmatpush.msra.mxu0 %v37
  %314 = vmatpush.msra.mxu0 %v36
  %315 = vmatpush.msra.mxu0 %v35
  %316 = vmatpush.msra.mxu0 %v34
  %317 = vmatpush.msra.mxu0 %v33
  %318 = vmatpush.msra.mxu0 %v32
  %319 = vmatpush.msra.mxu0 %v31
  %320 = vmatpush.msra.mxu0 %v30
  %321 = vmatmul.f32.gmra.mxu0 %v254
  %v322 = vpop.f32.mrf.mxu0
  %v323 = vadd.f32 %v285, %v322
  %324 = vmatmul.f32.gmra.mxu0 %v256
  %v325 = vpop.f32.mrf.mxu0
  %v326 = vadd.f32 %v288, %v325
  %327 = vmatmul.f32.gmra.mxu0 %v258
  %v328 = vpop.f32.mrf.mxu0
  %v329 = vadd.f32 %v291, %v328
  %330 = vmatmul.f32.gmra.mxu0 %v260
  %v331 = vpop.f32.mrf.mxu0
  %v332 = vadd.f32 %v294, %v331
  %333 = vmatmul.f32.gmra.mxu0 %v262
  %v334 = vpop.f32.mrf.mxu0
  %v335 = vadd.f32 %v297, %v334
  %336 = vmatmul.f32.gmra.mxu0 %v264
  %v337 = vpop.f32.mrf.mxu0
  %v338 = vadd.f32 %v300, %v337
  %339 = vmatmul.f32.gmra.mxu0 %v266
  %v340 = vpop.f32.mrf.mxu0
  %v341 = vadd.f32 %v303, %v340
  %342 = vdwg.mxu0
  %v343 = vmax.f32 %v323, 0.0
  %v344 = vmax.f32 %v326, 0.0
  %v345 = vmax.f32 %v329, 0.0
  %v346 = vmax.f32 %v332, 0.0
  %v347 = vmax.f32 %v335, 0.0
  %v348 = vmax.f32 %v338, 0.0
  %v349 = vmax.f32 %v341, 0.0
  %s350 = scalar_lea.vmem %s0, 336
  %v351 = vld [vmem:[%s350] sm:$0xff]
  %v352 = vld [vmem:[%s350 + $0x8] sm:$0xff]
  %v353 = vld [vmem:[%s350 + $0x10] sm:$0xff]
  %v354 = vld [vmem:[%s350 + $0x18] sm:$0xff]
  %v355 = vld [vmem:[%s350 + $0x20] sm:$0xff]
  %v356 = vld [vmem:[%s350 + $0x28] sm:$0xff]
  %v357 = vld [vmem:[%s350 + $0x30] sm:$0xff]
  %v358 = vld [vmem:[%s350 + $0x38] sm:$0xff]
  %v359 = vld [vmem:[%s350 + $0x40] sm:$0xff]
  %v360 = vld [vmem:[%s350 + $0x48] sm:$0xff]
  %v361 = vld [vmem:[%s350 + $0x50] sm:$0xff]
  %v362 = vld [vmem:[%s350 + $0x58] sm:$0xff]
  %v363 = vld [vmem:[%s350 + $0x60] sm:$0xff]
  %v364 = vld [vmem:[%s350 + $0x68] sm:$0xff]
  %365 = vmatpush.msra.mxu0 %v29
  %366 = vmatpush.msra.mxu0 %v28
  %367 = vmatpush.msra.mxu0 %v27
  %368 = vmatpush.msra.mxu0 %v26
  %369 = vmatpush.msra.mxu0 %v25
  %370 = vmatpush.msra.mxu0 %v24
  %371 = vmatpush.msra.mxu0 %v23
  %372 = vmatpush.msra.mxu0 %v22
  %373 = vmatpush.msra.mxu0 %v21
  %374 = vmatpush.msra.mxu0 %v20
  %375 = vmatpush.msra.mxu0 %v19
  %376 = vmatpush.msra.mxu0 %v18
  %377 = vmatpush.msra.mxu0 %v17
  %378 = vmatpush.msra.mxu0 %v16
  %379 = vmatpush.msra.mxu0 %v15
  %380 = vmatpush.msra.mxu0 %v14
  %381 = vmatmul.f32.gmra.mxu0 %v351
  %v382 = vpop.f32.mrf.mxu0
  %v383 = vadd.f32 %v62, %v382
  %384 = vmatmul.f32.gmra.mxu0 %v353
  %v385 = vpop.f32.mrf.mxu0
  %v386 = vadd.f32 %v62, %v385
  %387 = vmatmul.f32.gmra.mxu0 %v355
  %v388 = vpop.f32.mrf.mxu0
  %v389 = vadd.f32 %v62, %v388
  %390 = vmatmul.f32.gmra.mxu0 %v357
  %v391 = vpop.f32.mrf.mxu0
  %v392 = vadd.f32 %v62, %v391
  %393 = vmatmul.f32.gmra.mxu0 %v359
  %v394 = vpop.f32.mrf.mxu0
  %v395 = vadd.f32 %v62, %v394
  %396 = vmatmul.f32.gmra.mxu0 %v361
  %v397 = vpop.f32.mrf.mxu0
  %v398 = vadd.f32 %v62, %v397
  %399 = vmatmul.f32.gmra.mxu0 %v363
  %v400 = vpop.f32.mrf.mxu0
  %v401 = vadd.f32 %v62, %v400
  %402 = vdwg.mxu0
  %403 = vmatpush.msra.mxu0 %v45
  %404 = vmatpush.msra.mxu0 %v44
  %405 = vmatpush.msra.mxu0 %v43
  %406 = vmatpush.msra.mxu0 %v42
  %407 = vmatpush.msra.mxu0 %v41
  %408 = vmatpush.msra.mxu0 %v40
  %409 = vmatpush.msra.mxu0 %v39
  %410 = vmatpush.msra.mxu0 %v38
  %411 = vmatpush.msra.mxu0 %v37
  %412 = vmatpush.msra.mxu0 %v36
  %413 = vmatpush.msra.mxu0 %v35
  %414 = vmatpush.msra.mxu0 %v34
  %415 = vmatpush.msra.mxu0 %v33
  %416 = vmatpush.msra.mxu0 %v32
  %417 = vmatpush.msra.mxu0 %v31
  %418 = vmatpush.msra.mxu0 %v30
  %419 = vmatmul.f32.gmra.mxu0 %v352
  %v420 = vpop.f32.mrf.mxu0
  %v421 = vadd.f32 %v383, %v420
  %422 = vmatmul.f32.gmra.mxu0 %v354
  %v423 = vpop.f32.mrf.mxu0
  %v424 = vadd.f32 %v386, %v423
  %425 = vmatmul.f32.gmra.mxu0 %v356
  %v426 = vpop.f32.mrf.mxu0
  %v427 = vadd.f32 %v389, %v426
  %428 = vmatmul.f32.gmra.mxu0 %v358
  %v429 = vpop.f32.mrf.mxu0
  %v430 = vadd.f32 %v392, %v429
  %431 = vmatmul.f32.gmra.mxu0 %v360
  %v432 = vpop.f32.mrf.mxu0
  %v433 = vadd.f32 %v395, %v432
  %434 = vmatmul.f32.gmra.mxu0 %v362
  %v435 = vpop.f32.mrf.mxu0
  %v436 = vadd.f32 %v398, %v435
  %437 = vmatmul.f32.gmra.mxu0 %v364
  %v438 = vpop.f32.mrf.mxu0
  %v439 = vadd.f32 %v401, %v438
  %440 = vdwg.mxu0
  %v441 = vmax.f32 %v421, 0.0
  %v442 = vmax.f32 %v424, 0.0
  %v443 = vmax.f32 %v427, 0.0
  %v444 = vmax.f32 %v430, 0.0
  %v445 = vmax.f32 %v433, 0.0
  %v446 = vmax.f32 %v436, 0.0
  %v447 = vmax.f32 %v439, 0.0
  %v448 = vmax.f32 %v343, %v441
  %v449 = vmax.f32 %v344, %v442
  %v450 = vmax.f32 %v345, %v443
  %v451 = vmax.f32 %v346, %v444
  %v452 = vmax.f32 %v347, %v445
  %v453 = vmax.f32 %v348, %v446
  %v454 = vmax.f32 %v349, %v447
  %v455 = vmax.f32 %v245, %v448
  %v456 = vmax.f32 %v246, %v449
  %v457 = vmax.f32 %v247, %v450
  %v458 = vmax.f32 %v248, %v451
  %v459 = vmax.f32 %v249, %v452
  %v460 = vmax.f32 %v250, %v453
  %v461 = vmax.f32 %v251, %v454
  %462 = vst [vmem:[%s3] sm:$0xff] %v455
  %463 = vst [vmem:[%s3 + $0x8] sm:$0xff] %v456
  %464 = vst [vmem:[%s3 + $0x10] sm:$0xff] %v457
  %465 = vst [vmem:[%s3 + $0x18] sm:$0xff] %v458
  %466 = vst [vmem:[%s3 + $0x20] sm:$0xff] %v459
  %467 = vst [vmem:[%s3 + $0x28] sm:$0xff] %v460
  %468 = vst [vmem:[%s3 + $0x30] sm:$0xff] %v461
  // Predicated region
  $region14: #{net_forward.4} parent=0 // pred_check
    _
  $region15: #{net_forward.4} parent=0 // pred_check_branch
    %470 = sbr.rel (0) target = $region17
  $region16: #{net_forward.4} parent=0 // pred_region
    _
  $region17: #{net_forward.4} parent=0 // pred_fallthru
    _
  // Predicated region
  $region18: #{net_forward.4} parent=0 // pred_check
    _
  $region19: #{net_forward.4} parent=0 // pred_check_branch
    %472 = sbr.rel (0) target = $region21
  $region20: #{net_forward.4} parent=0 // pred_region
    _
  $region21: #{net_forward.4} parent=0 // pred_fallthru
    _

// kernel: net_forward.5
$region0: #{net_forward.5}
  #allocation0 [shape = 'u32[]', space=smem, size = 0x4, offset = 0x4, fixed_abs, tag = 'smem constant byte address 0x4 - core index']
  #allocation1 [shape = 'u32[72,128]{1,0:T(1,128)}', space=vmem, size = 0x9000, scoped, tag = 'internal scratch']
  %s0 = inlined_call_operand.vmem [shape: f32[8,512], index: 0, kind: input, shape index: {}]
  %s1 = inlined_call_operand.vmem [shape: f32[512,128], index: 1, kind: input, shape index: {}]
  %s2 = inlined_call_operand.vmem [shape: f32[1,128], index: 2, kind: input, shape index: {}]
  %s3 = inlined_call_operand.vmem [shape: f32[128,128], index: 3, kind: input, shape index: {}]
  %s4 = inlined_call_operand.vmem [shape: f32[1,128], index: 4, kind: input, shape index: {}]
  %s5 = inlined_call_operand.vmem [shape: f32[128,128], index: 5, kind: input, shape index: {}]
  %s6 = inlined_call_operand.vmem [shape: f32[1,128], index: 6, kind: input, shape index: {}]
  %s7 = inlined_call_operand.vmem [shape: f32[8,128], index: 7, kind: output, shape index: {}]
  %s8 = sld [smem:[#allocation0]]
  $region38: #{net_forward.5} parent=0
    _
  %s10 = ssub.s32 1, %s8
  %s11 = scalar_select 0, %s10, %s8
  // Predicated region
  $region2: #{net_forward.5} parent=0 // pred_check
    _
  $region3: #{net_forward.5} parent=0 // pred_check_branch
    %13 = sbr.rel (0) target = $region5
  $region4: #{net_forward.5} parent=0 // pred_region
    _
  $region5: #{net_forward.5} parent=0 // pred_fallthru
    _
  // Predicated region
  $region6: #{net_forward.5} parent=0 // pred_check
    _
  $region7: #{net_forward.5} parent=0 // pred_check_branch
    %15 = sbr.rel (0) target = $region9
  $region8: #{net_forward.5} parent=0 // pred_region
    _
  $region9: #{net_forward.5} parent=0 // pred_fallthru
    _
  // Predicated region
  $region10: #{net_forward.5} parent=0 // pred_check
    _
  $region11: #{net_forward.5} parent=0 // pred_check_branch
    %17 = sbr.rel (0) target = $region13
  $region12: #{net_forward.5} parent=0 // pred_region
    _
  $region13: #{net_forward.5} parent=0 // pred_fallthru
    _
  // Predicated region
  $region14: #{net_forward.5} parent=0 // pred_check
    _
  $region15: #{net_forward.5} parent=0 // pred_check_branch
    %19 = sbr.rel (0) target = $region17
  $region16: #{net_forward.5} parent=0 // pred_region
    _
  $region17: #{net_forward.5} parent=0 // pred_fallthru
    _
  // Predicated region
  $region18: #{net_forward.5} parent=0 // pred_check
    _
  $region19: #{net_forward.5} parent=0 // pred_check_branch
    %21 = sbr.rel (0) target = $region21
  $region20: #{net_forward.5} parent=0 // pred_region
    _
  $region21: #{net_forward.5} parent=0 // pred_fallthru
    _
  // Predicated region
  $region22: #{net_forward.5} parent=0 // pred_check
    _
  $region23: #{net_forward.5} parent=0 // pred_check_branch
    %23 = sbr.rel (0) target = $region25
  $region24: #{net_forward.5} parent=0 // pred_region
    _
  $region25: #{net_forward.5} parent=0 // pred_fallthru
    _
  // Predicated region
  $region26: #{net_forward.5} parent=0 // pred_check
    _
  $region27: #{net_forward.5} parent=0 // pred_check_branch
    %25 = sbr.rel (0) target = $region29
  $region28: #{net_forward.5} parent=0 // pred_region
    _
  $region29: #{net_forward.5} parent=0 // pred_fallthru
    _
  %v26 = vld [vmem:[%s0] sm:$0xff]
  %v27 = vld [vmem:[%s0 + $0x8] sm:$0xff]
  %v28 = vld [vmem:[%s0 + $0x10] sm:$0xff]
  %v29 = vld [vmem:[%s0 + $0x18] sm:$0xff]
  %v30 = vld [vmem:[%s1] sm:$0xff]
  %v31 = vld [vmem:[%s1 + $0x8] sm:$0xff]
  %v32 = vld [vmem:[%s1 + $0x10] sm:$0xff]
  %v33 = vld [vmem:[%s1 + $0x18] sm:$0xff]
  %v34 = vld [vmem:[%s1 + $0x20] sm:$0xff]
  %v35 = vld [vmem:[%s1 + $0x28] sm:$0xff]
  %v36 = vld [vmem:[%s1 + $0x30] sm:$0xff]
  %v37 = vld [vmem:[%s1 + $0x38] sm:$0xff]
  %v38 = vld [vmem:[%s1 + $0x40] sm:$0xff]
  %v39 = vld [vmem:[%s1 + $0x48] sm:$0xff]
  %v40 = vld [vmem:[%s1 + $0x50] sm:$0xff]
  %v41 = vld [vmem:[%s1 + $0x58] sm:$0xff]
  %v42 = vld [vmem:[%s1 + $0x60] sm:$0xff]
  %v43 = vld [vmem:[%s1 + $0x68] sm:$0xff]
  %v44 = vld [vmem:[%s1 + $0x70] sm:$0xff]
  %v45 = vld [vmem:[%s1 + $0x78] sm:$0xff]
  %v46 = vld [vmem:[%s1 + $0x80] sm:$0xff]
  %v47 = vld [vmem:[%s1 + $0x88] sm:$0xff]
  %v48 = vld [vmem:[%s1 + $0x90] sm:$0xff]
  %v49 = vld [vmem:[%s1 + $0x98] sm:$0xff]
  %v50 = vld [vmem:[%s1 + $0xa0] sm:$0xff]
  %v51 = vld [vmem:[%s1 + $0xa8] sm:$0xff]
  %v52 = vld [vmem:[%s1 + $0xb0] sm:$0xff]
  %v53 = vld [vmem:[%s1 + $0xb8] sm:$0xff]
  %v54 = vld [vmem:[%s1 + $0xc0] sm:$0xff]
  %v55 = vld [vmem:[%s1 + $0xc8] sm:$0xff]
  %v56 = vld [vmem:[%s1 + $0xd0] sm:$0xff]
  %v57 = vld [vmem:[%s1 + $0xd8] sm:$0xff]
  %v58 = vld [vmem:[%s1 + $0xe0] sm:$0xff]
  %v59 = vld [vmem:[%s1 + $0xe8] sm:$0xff]
  %v60 = vld [vmem:[%s1 + $0xf0] sm:$0xff]
  %v61 = vld [vmem:[%s1 + $0xf8] sm:$0xff]
  %v62 = vld [vmem:[%s1 + $0x100] sm:$0xff]
  %v63 = vld [vmem:[%s1 + $0x108] sm:$0xff]
  %v64 = vld [vmem:[%s1 + $0x110] sm:$0xff]
  %v65 = vld [vmem:[%s1 + $0x118] sm:$0xff]
  %v66 = vld [vmem:[%s1 + $0x120] sm:$0xff]
  %v67 = vld [vmem:[%s1 + $0x128] sm:$0xff]
  %v68 = vld [vmem:[%s1 + $0x130] sm:$0xff]
  %v69 = vld [vmem:[%s1 + $0x138] sm:$0xff]
  %v70 = vld [vmem:[%s1 + $0x140] sm:$0xff]
  %v71 = vld [vmem:[%s1 + $0x148] sm:$0xff]
  %v72 = vld [vmem:[%s1 + $0x150] sm:$0xff]
  %v73 = vld [vmem:[%s1 + $0x158] sm:$0xff]
  %v74 = vld [vmem:[%s1 + $0x160] sm:$0xff]
  %v75 = vld [vmem:[%s1 + $0x168] sm:$0xff]
  %v76 = vld [vmem:[%s1 + $0x170] sm:$0xff]
  %v77 = vld [vmem:[%s1 + $0x178] sm:$0xff]
  %v78 = vld [vmem:[%s1 + $0x180] sm:$0xff]
  %v79 = vld [vmem:[%s1 + $0x188] sm:$0xff]
  %v80 = vld [vmem:[%s1 + $0x190] sm:$0xff]
  %v81 = vld [vmem:[%s1 + $0x198] sm:$0xff]
  %v82 = vld [vmem:[%s1 + $0x1a0] sm:$0xff]
  %v83 = vld [vmem:[%s1 + $0x1a8] sm:$0xff]
  %v84 = vld [vmem:[%s1 + $0x1b0] sm:$0xff]
  %v85 = vld [vmem:[%s1 + $0x1b8] sm:$0xff]
  %v86 = vld [vmem:[%s1 + $0x1c0] sm:$0xff]
  %v87 = vld [vmem:[%s1 + $0x1c8] sm:$0xff]
  %v88 = vld [vmem:[%s1 + $0x1d0] sm:$0xff]
  %v89 = vld [vmem:[%s1 + $0x1d8] sm:$0xff]
  %v90 = vld [vmem:[%s1 + $0x1e0] sm:$0xff]
  %v91 = vld [vmem:[%s1 + $0x1e8] sm:$0xff]
  %v92 = vld [vmem:[%s1 + $0x1f0] sm:$0xff]
  %v93 = vld [vmem:[%s1 + $0x1f8] sm:$0xff]
  %v94 = vld [vmem:[%s2] sm:$0x1]
  %v96 = vperm.slane %v94, 0
  %98 = vmatpush.msra.mxu0 %v45
  %99 = vmatpush.msra.mxu0 %v44
  %100 = vmatpush.msra.mxu0 %v43
  %101 = vmatpush.msra.mxu0 %v42
  %102 = vmatpush.msra.mxu0 %v41
  %103 = vmatpush.msra.mxu0 %v40
  %104 = vmatpush.msra.mxu0 %v39
  %105 = vmatpush.msra.mxu0 %v38
  %106 = vmatpush.msra.mxu0 %v37
  %107 = vmatpush.msra.mxu0 %v36
  %108 = vmatpush.msra.mxu0 %v35
  %109 = vmatpush.msra.mxu0 %v34
  %110 = vmatpush.msra.mxu0 %v33
  %111 = vmatpush.msra.mxu0 %v32
  %112 = vmatpush.msra.mxu0 %v31
  %113 = vmatpush.msra.mxu0 %v30
  %114 = vmatmul.f32.gmra.mxu0 %v26
  %v115 = vpop.f32.mrf.mxu0
  %v116 = vadd.f32 %v96, %v115
  %117 = vdwg.mxu0
  %118 = vmatpush.msra.mxu0 %v61
  %119 = vmatpush.msra.mxu0 %v60
  %120 = vmatpush.msra.mxu0 %v59
  %121 = vmatpush.msra.mxu0 %v58
  %122 = vmatpush.msra.mxu0 %v57
  %123 = vmatpush.msra.mxu0 %v56
  %124 = vmatpush.msra.mxu0 %v55
  %125 = vmatpush.msra.mxu0 %v54
  %126 = vmatpush.msra.mxu0 %v53
  %127 = vmatpush.msra.mxu0 %v52
  %128 = vmatpush.msra.mxu0 %v51
  %129 = vmatpush.msra.mxu0 %v50
  %130 = vmatpush.msra.mxu0 %v49
  %131 = vmatpush.msra.mxu0 %v48
  %132 = vmatpush.msra.mxu0 %v47
  %133 = vmatpush.msra.mxu0 %v46
  %134 = vmatmul.f32.gmra.mxu0 %v27
  %v135 = vpop.f32.mrf.mxu0
  %v136 = vadd.f32 %v116, %v135
  %137 = vdwg.mxu0
  %138 = vmatpush.msra.mxu0 %v77
  %139 = vmatpush.msra.mxu0 %v76
  %140 = vmatpush.msra.mxu0 %v75
  %141 = vmatpush.msra.mxu0 %v74
  %142 = vmatpush.msra.mxu0 %v73
  %143 = vmatpush.msra.mxu0 %v72
  %144 = vmatpush.msra.mxu0 %v71
  %145 = vmatpush.msra.mxu0 %v70
  %146 = vmatpush.msra.mxu0 %v69
  %147 = vmatpush.msra.mxu0 %v68
  %148 = vmatpush.msra.mxu0 %v67
  %149 = vmatpush.msra.mxu0 %v66
  %150 = vmatpush.msra.mxu0 %v65
  %151 = vmatpush.msra.mxu0 %v64
  %152 = vmatpush.msra.mxu0 %v63
  %153 = vmatpush.msra.mxu0 %v62
  %154 = vmatmul.f32.gmra.mxu0 %v28
  %v155 = vpop.f32.mrf.mxu0
  %v156 = vadd.f32 %v136, %v155
  %157 = vdwg.mxu0
  %158 = vmatpush.msra.mxu0 %v93
  %159 = vmatpush.msra.mxu0 %v92
  %160 = vmatpush.msra.mxu0 %v91
  %161 = vmatpush.msra.mxu0 %v90
  %162 = vmatpush.msra.mxu0 %v89
  %163 = vmatpush.msra.mxu0 %v88
  %164 = vmatpush.msra.mxu0 %v87
  %165 = vmatpush.msra.mxu0 %v86
  %166 = vmatpush.msra.mxu0 %v85
  %167 = vmatpush.msra.mxu0 %v84
  %168 = vmatpush.msra.mxu0 %v83
  %169 = vmatpush.msra.mxu0 %v82
  %170 = vmatpush.msra.mxu0 %v81
  %171 = vmatpush.msra.mxu0 %v80
  %172 = vmatpush.msra.mxu0 %v79
  %173 = vmatpush.msra.mxu0 %v78
  %174 = vmatmul.f32.gmra.mxu0 %v29
  %v175 = vpop.f32.mrf.mxu0
  %v176 = vadd.f32 %v156, %v175
  %177 = vdwg.mxu0
  %v178 = vmax.f32 %v176, 0.0
  %v179 = vld [vmem:[%s3] sm:$0xff]
  %v180 = vld [vmem:[%s3 + $0x8] sm:$0xff]
  %v181 = vld [vmem:[%s3 + $0x10] sm:$0xff]
  %v182 = vld [vmem:[%s3 + $0x18] sm:$0xff]
  %v183 = vld [vmem:[%s3 + $0x20] sm:$0xff]
  %v184 = vld [vmem:[%s3 + $0x28] sm:$0xff]
  %v185 = vld [vmem:[%s3 + $0x30] sm:$0xff]
  %v186 = vld [vmem:[%s3 + $0x38] sm:$0xff]
  %v187 = vld [vmem:[%s3 + $0x40] sm:$0xff]
  %v188 = vld [vmem:[%s3 + $0x48] sm:$0xff]
  %v189 = vld [vmem:[%s3 + $0x50] sm:$0xff]
  %v190 = vld [vmem:[%s3 + $0x58] sm:$0xff]
  %v191 = vld [vmem:[%s3 + $0x60] sm:$0xff]
  %v192 = vld [vmem:[%s3 + $0x68] sm:$0xff]
  %v193 = vld [vmem:[%s3 + $0x70] sm:$0xff]
  %v194 = vld [vmem:[%s3 + $0x78] sm:$0xff]
  %v195 = vld [vmem:[%s4] sm:$0x1]
  %v197 = vperm.slane %v195, 0
  %199 = vmatpush.msra.mxu0 %v194
  %200 = vmatpush.msra.mxu0 %v193
  %201 = vmatpush.msra.mxu0 %v192
  %202 = vmatpush.msra.mxu0 %v191
  %203 = vmatpush.msra.mxu0 %v190
  %204 = vmatpush.msra.mxu0 %v189
  %205 = vmatpush.msra.mxu0 %v188
  %206 = vmatpush.msra.mxu0 %v187
  %207 = vmatpush.msra.mxu0 %v186
  %208 = vmatpush.msra.mxu0 %v185
  %209 = vmatpush.msra.mxu0 %v184
  %210 = vmatpush.msra.mxu0 %v183
  %211 = vmatpush.msra.mxu0 %v182
  %212 = vmatpush.msra.mxu0 %v181
  %213 = vmatpush.msra.mxu0 %v180
  %214 = vmatpush.msra.mxu0 %v179
  %215 = vmatmul.f32.gmra.mxu0 %v178
  %v216 = vpop.f32.mrf.mxu0
  %v217 = vadd.f32 %v197, %v216
  %218 = vdwg.mxu0
  %v219 = vmax.f32 %v217, 0.0
  %v220 = vld [vmem:[%s5] sm:$0xff]
  %v221 = vld [vmem:[%s5 + $0x8] sm:$0xff]
  %v222 = vld [vmem:[%s5 + $0x10] sm:$0xff]
  %v223 = vld [vmem:[%s5 + $0x18] sm:$0xff]
  %v224 = vld [vmem:[%s5 + $0x20] sm:$0xff]
  %v225 = vld [vmem:[%s5 + $0x28] sm:$0xff]
  %v226 = vld [vmem:[%s5 + $0x30] sm:$0xff]
  %v227 = vld [vmem:[%s5 + $0x38] sm:$0xff]
  %v228 = vld [vmem:[%s5 + $0x40] sm:$0xff]
  %v229 = vld [vmem:[%s5 + $0x48] sm:$0xff]
  %v230 = vld [vmem:[%s5 + $0x50] sm:$0xff]
  %v231 = vld [vmem:[%s5 + $0x58] sm:$0xff]
  %v232 = vld [vmem:[%s5 + $0x60] sm:$0xff]
  %v233 = vld [vmem:[%s5 + $0x68] sm:$0xff]
  %v234 = vld [vmem:[%s5 + $0x70] sm:$0xff]
  %v235 = vld [vmem:[%s5 + $0x78] sm:$0xff]
  %v236 = vld [vmem:[%s6] sm:$0x1]
  %v238 = vperm.slane %v236, 0
  %240 = vmatpush.msra.mxu0 %v235
  %241 = vmatpush.msra.mxu0 %v234
  %242 = vmatpush.msra.mxu0 %v233
  %243 = vmatpush.msra.mxu0 %v232
  %244 = vmatpush.msra.mxu0 %v231
  %245 = vmatpush.msra.mxu0 %v230
  %246 = vmatpush.msra.mxu0 %v229
  %247 = vmatpush.msra.mxu0 %v228
  %248 = vmatpush.msra.mxu0 %v227
  %249 = vmatpush.msra.mxu0 %v226
  %250 = vmatpush.msra.mxu0 %v225
  %251 = vmatpush.msra.mxu0 %v224
  %252 = vmatpush.msra.mxu0 %v223
  %253 = vmatpush.msra.mxu0 %v222
  %254 = vmatpush.msra.mxu0 %v221
  %255 = vmatpush.msra.mxu0 %v220
  %256 = vmatmul.f32.gmra.mxu0 %v219
  %v257 = vpop.f32.mrf.mxu0
  %v258 = vadd.f32 %v238, %v257
  %259 = vdwg.mxu0
  %260 = vst [vmem:[%s7] sm:$0xff] %v258
  // Predicated region
  $region30: #{net_forward.5} parent=0 // pred_check
    _
  $region31: #{net_forward.5} parent=0 // pred_check_branch
    %262 = sbr.rel (0) target = $region33
  $region32: #{net_forward.5} parent=0 // pred_region
    _
  $region33: #{net_forward.5} parent=0 // pred_fallthru
    _
  // Predicated region
  $region34: #{net_forward.5} parent=0 // pred_check
    _
  $region35: #{net_forward.5} parent=0 // pred_check_branch
    %264 = sbr.rel (0) target = $region37
  $region36: #{net_forward.5} parent=0 // pred_region
    _
  $region37: #{net_forward.5} parent=0 // pred_fallthru
    _

</llo_original>
